<compile_context>
chip_gen: v7x
topology: tpu7x:2x2x1
jax: 0.10.0
libtpu: 0.0.40
codegen_flags: <defaults>
</compile_context>

<pallas_src>
import jax
import jax.numpy as jnp
from jax import lax
from jax.experimental import pallas as pl
from jax.experimental.pallas import tpu as pltpu

# ---------------- problem constants (small demo shapes consistent with the module) ------
H = 16
W = 16
WP = W + 2                         # 18: extended row width of the flat spatial layout
FLAT_H = H * WP                    # 288 extended pixels / image (cols 16,17 are garbage)
CIN = 3
COUT = 32
SLOT = 32                          # per-pixel lane slot in the packed layout (27+1+4)
PACK = FLAT_H // 4                 # 72 packed rows (4 ext-pixels x 32 ch = 128 lanes)
BORD = WP + 1                      # 19: max |tap offset| -> per-chunk border rows in hp
HP_OFF = 24                        # row of pixel-0 of each chunk inside the hp scratch
HP_LEN = 128                       # hp scratch rows (>= HP_OFF + PACK + BORD = 115)

LRN_SIZE = 5
LRN_ALPHA = 1e-4
LRN_BETA = 0.75
LRN_K = 1.0


def dcf_feature_kernel(pat_ref, w1_ref, w2_ref, b2_ref, band_ref, o_ref, hp_ref):
    nb = pat_ref.shape[0]
    f32, bf16 = jnp.float32, jnp.bfloat16

    # loop-invariant values, hoisted out of the per-image loop
    zpad = jnp.zeros((BORD, COUT), bf16)
    b2row = jnp.broadcast_to(b2_ref[...], (PACK, 4 * COUT)).astype(f32)

    for b in range(nb):            # static unroll; per-image keeps the live vreg set tiny
        # ---- conv1 (+bias; garbage-column zeroing folded into pat): one 128x128 dot ----
        acc1 = jnp.dot(pat_ref[b], w1_ref[...], preferred_element_type=f32)   # (72,128)
        h = jnp.maximum(acc1, 0.0).astype(bf16)                               # (72,128)

        # ---- re-pad h in the packed-chunk hp layout --------------------------------------
        # main region: lane group j, row HP_OFF+s holds ext-pixel 72j+s
        hp_ref[b, HP_OFF:HP_OFF + PACK, :] = h
        # top border of group j = last BORD rows of group j-1 (group 0 border = zeros)
        hp_ref[b, HP_OFF - BORD:HP_OFF, :] = jnp.concatenate(
            [zpad, h[PACK - BORD:, :3 * COUT]], axis=-1)
        # bottom border of group j = first BORD rows of group j+1 (group 3 border = zeros)
        hp_ref[b, HP_OFF + PACK:HP_OFF + PACK + BORD, :] = jnp.concatenate(
            [h[:BORD, COUT:], zpad], axis=-1)
        # rows outside [HP_OFF-BORD, HP_OFF+PACK+BORD) are never read -> no zeroing needed

        # ---- conv2 (+bias): 9 accumulating block-diagonal bf16 MXU dots ------------------
        z = b2row
        for t in range(9):
            dy, dx = t // 3, t % 3
            off = HP_OFF + dy * WP + dx - (WP + 1)          # 5..43, static
            z = z + jnp.dot(hp_ref[b, off:off + PACK, :], w2_ref[t],
                            preferred_element_type=f32)     # (72,128) f32

        # ---- LRN(5, 1e-4, 0.75, k=1) over channels, packed 128-lane layout ---------------
        sq = (z * z).astype(bf16)
        wsum = jnp.dot(sq, band_ref[...], preferred_element_type=f32)
        base = LRN_K + (LRN_ALPHA / LRN_SIZE) * wsum         # >= 1, safe for log
        o_ref[b] = (z * jnp.exp(-LRN_BETA * jnp.log(base))).astype(o_ref.dtype)


def _pick_batch_block(n):
    # Largest block <= 8 (amortize per-step overhead; bound static unroll & VMEM), while
    # preferring >=4 grid steps (v7x: 2 TCs, each keeps cross-step DMA/compute overlap),
    # falling back to >=2 steps, then a single step.
    for min_steps in (4, 2, 1):
        for nb in (8, 4, 2, 1):
            if n % nb == 0 and n // nb >= min_steps:
                return nb
    return 1


def dcfnet_feature(x_nchw, w1, b1, w2, b2):
    """x_nchw: (N, 3, H, W); weights in PyTorch layout (O, I, kh, kw)."""
    f32, bf16 = jnp.float32, jnp.bfloat16
    N = x_nchw.shape[0]
    NB = _pick_batch_block(N)

    # ---- conv1 im2col + 4-pixel lane-dense pack (wrapper-side layout plumbing) ----------
    x = jnp.transpose(x_nchw, (0, 2, 3, 1)).astype(f32)                    # (N,16,16,3)
    xp = jnp.pad(x, ((0, 0), (1, 1), (1, 3), (0, 0)))                      # (N,18,20,3)
    taps = [xp[:, dy:dy + H, dx:dx + WP, :] for dy in range(3) for dx in range(3)]
    pat = jnp.stack(taps, axis=3).reshape(N, FLAT_H, 9 * CIN)              # (N,288,27)
    pat = jnp.concatenate(
        [pat, jnp.ones((N, FLAT_H, 1), f32),
         jnp.zeros((N, FLAT_H, SLOT - 9 * CIN - 1), f32)], axis=-1)        # (N,288,32)
    valid = (jnp.arange(FLAT_H) % WP < W).astype(f32)                      # garbage cols->0
    pat = pat * valid[None, :, None]                                       # (incl. bias lane)
    pat = pat.reshape(N, 4, PACK, SLOT).transpose(0, 2, 1, 3).reshape(N, PACK, 4 * SLOT)
    pat = pat.astype(bf16)                                                 # (N,72,128)

    # ---- block-diagonal stacked weights (biases folded / passed as resident inputs) -----
    eye4 = jnp.eye(4, dtype=f32)
    w1t = jnp.transpose(w1, (2, 3, 1, 0)).reshape(9 * CIN, COUT).astype(f32)
    blk1 = jnp.concatenate([w1t, b1.reshape(1, COUT).astype(f32),
                            jnp.zeros((SLOT - 9 * CIN - 1, COUT), f32)], axis=0)  # (32,32)
    w1bd = jnp.kron(eye4, blk1).astype(bf16)                                       # (128,128)

    w2t = jnp.transpose(w2, (2, 3, 1, 0)).reshape(9, COUT, COUT).astype(f32)
    w2bd = jnp.stack([jnp.kron(eye4, w2t[t]) for t in range(9)], axis=0).astype(bf16)  # (9,128,128)

    b2p = jnp.tile(b2.astype(f32).reshape(1, COUT), (1, 4))                # (1,128)

    # LRN band: block-diagonal banded matrix (each 32-lane block = one pixel's channels)
    ii = jnp.arange(128)[:, None]
    jj = jnp.arange(128)[None, :]
    band = ((jnp.abs(ii - jj) <= LRN_SIZE // 2) &
            ((ii // COUT) == (jj // COUT))).astype(bf16)                   # (128,128)

    out = pl.pallas_call(
        dcf_feature_kernel,
        out_shape=jax.ShapeDtypeStruct((N, PACK, 128), bf16),
        grid=(N // NB,),
        in_specs=[
            pl.BlockSpec((NB, PACK, 128), lambda n: (n, 0, 0)),    # packed conv1 patches
            pl.BlockSpec((128, 128), lambda n: (0, 0)),            # w1 block-diag (+b1)
            pl.BlockSpec((9, 128, 128), lambda n: (0, 0, 0)),      # w2 block-diag per tap
            pl.BlockSpec((1, 4 * COUT), lambda n: (0, 0)),         # b2 packed row
            pl.BlockSpec((128, 128), lambda n: (0, 0)),            # LRN band matrix
        ],
        out_specs=pl.BlockSpec((NB, PACK, 128), lambda n: (n, 0, 0)),
        scratch_shapes=[
            pltpu.VMEM((NB, HP_LEN, 128), bf16),                   # packed, bordered conv1 out
        ],
        compiler_params=pltpu.CompilerParams(dimension_semantics=("parallel",)),
    )(pat, w1bd, w2bd, b2p, band)

    # unpack: lanes [32j, 32j+32) of packed row s hold ext-pixel p = j*72 + s
    y = out.astype(f32).reshape(N, PACK, 4, COUT).transpose(0, 2, 1, 3).reshape(N, FLAT_H, COUT)
    y = y.reshape(N, H, WP, COUT)[:, :, :W, :]          # drop the 2 garbage columns
    return jnp.transpose(y, (0, 3, 1, 2))               # back to NCHW


def reference(x, w1, b1, w2, b2):
    """Pure-JAX reference of the PyTorch module (NCHW, f32)."""
    dn = ("NCHW", "OIHW", "NCHW")
    y = lax.conv_general_dilated(x, w1, (1, 1), ((1, 1), (1, 1)), dimension_numbers=dn)
    y = y + b1[None, :, None, None]
    y = jnp.maximum(y, 0.0)
    y = lax.conv_general_dilated(y, w2, (1, 1), ((1, 1), (1, 1)), dimension_numbers=dn)
    y = y + b2[None, :, None, None]
    sq = y * y
    sqp = jnp.pad(sq, ((0, 0), (2, 2), (0, 0), (0, 0)))
    wsum = sum(sqp[:, d:d + COUT] for d in range(LRN_SIZE))
    denom = (LRN_K + (LRN_ALPHA / LRN_SIZE) * wsum) ** LRN_BETA
    return y / denom


if __name__ == "__main__":
    key = jax.random.PRNGKey(0)
    k1, k2, k3, k4, k5 = jax.random.split(key, 5)
    N = 2
    x = jax.random.normal(k1, (N, CIN, H, W), jnp.float32)

    # deterministic PyTorch-style (kaiming-uniform-ish) init
    bnd1 = 1.0 / (CIN * 9) ** 0.5
    w1 = jax.random.uniform(k2, (COUT, CIN, 3, 3), jnp.float32, -bnd1, bnd1)
    b1 = jax.random.uniform(k3, (COUT,), jnp.float32, -bnd1, bnd1)
    bnd2 = 1.0 / (COUT * 9) ** 0.5
    w2 = jax.random.uniform(k4, (COUT, COUT, 3, 3), jnp.float32, -bnd2, bnd2)
    b2 = jax.random.uniform(k5, (COUT,), jnp.float32, -bnd2, bnd2)

    out = jax.jit(dcfnet_feature)(x, w1, b1, w2, b2)
    out = jax.block_until_ready(out)

    ref = reference(x, w1, b1, w2, b2)
    assert out.shape == (N, COUT, H, W), out.shape
    err = float(jnp.max(jnp.abs(out - ref)))
    assert err < 5e-2, f"max abs err {err}"
    print("KERNEL_OK")
</pallas_src>

<mosaic_0001>
module attributes {stable_mosaic.version = 11 : i64} {
  func.func @dcf_feature_kernel(%arg0: i32, %arg1: memref<1x72x128xbf16, #tpu.memory_space<vmem>>, %arg2: memref<128x128xbf16, #tpu.memory_space<vmem>>, %arg3: memref<9x128x128xbf16, #tpu.memory_space<vmem>>, %arg4: memref<1x128xf32, #tpu.memory_space<vmem>>, %arg5: memref<128x128xbf16, #tpu.memory_space<vmem>>, %arg6: memref<1x72x128xbf16, #tpu.memory_space<vmem>>, %arg7: memref<1x128x128xbf16, #tpu.memory_space<vmem>>) attributes {dimension_semantics = [#tpu.dimension_semantics<parallel>], iteration_bounds = array<i64: 2>, scalar_prefetch = 0 : i64, scratch_operands = 1 : i64, tpu.core_type = #tpu.core_type<tc>, window_params = [{transform_indices = @transform_0, window_bounds = array<i64: 1, 72, 128>}, {pipeline_mode = #tpu.pipeline_mode<synchronous>, transform_indices = @transform_1, window_bounds = array<i64: 128, 128>}, {pipeline_mode = #tpu.pipeline_mode<synchronous>, transform_indices = @transform_2, window_bounds = array<i64: 9, 128, 128>}, {pipeline_mode = #tpu.pipeline_mode<synchronous>, transform_indices = @transform_3, window_bounds = array<i64: 1, 128>}, {pipeline_mode = #tpu.pipeline_mode<synchronous>, transform_indices = @transform_4, window_bounds = array<i64: 128, 128>}, {transform_indices = @transform_5, window_bounds = array<i64: 1, 72, 128>}]} {
    %cst = arith.constant 0.000000e+00 : bf16
    %0 = vector.broadcast %cst : bf16 to vector<19x32xbf16>
    %c0 = arith.constant 0 : index
    %c0_0 = arith.constant 0 : index
    %1 = vector.load %arg4[%c0, %c0_0] : memref<1x128xf32, #tpu.memory_space<vmem>>, vector<1x128xf32>
    %2 = vector.shape_cast %1 : vector<1x128xf32> to vector<1x128xf32>
    %3 = vector.broadcast %2 : vector<1x128xf32> to vector<72x128xf32>
    %c0_1 = arith.constant 0 : index
    %c0_2 = arith.constant 0 : index
    %c0_3 = arith.constant 0 : index
    %4 = vector.load %arg1[%c0_1, %c0_2, %c0_3] : memref<1x72x128xbf16, #tpu.memory_space<vmem>>, vector<1x72x128xbf16>
    %5 = vector.shape_cast %4 : vector<1x72x128xbf16> to vector<72x128xbf16>
    %c0_4 = arith.constant 0 : index
    %c0_5 = arith.constant 0 : index
    %6 = vector.load %arg2[%c0_4, %c0_5] : memref<128x128xbf16, #tpu.memory_space<vmem>>, vector<128x128xbf16>
    %cst_6 = arith.constant dense<0.000000e+00> : vector<72x128xf32>
    %7 = tpu.matmul %5, %6, %cst_6 {dimension_numbers = #tpu.dot_dimension_numbers<[1], [0], [0], [1], [0, 0, 1, 1], [], []>} : vector<72x128xbf16>, vector<128x128xbf16>, vector<72x128xf32> -> vector<72x128xf32>
    %cst_7 = arith.constant 0.000000e+00 : f32
    %8 = vector.broadcast %cst_7 : f32 to vector<72x128xf32>
    %9 = arith.maximumf %7, %8 : vector<72x128xf32>
    %10 = arith.truncf %9 : vector<72x128xf32> to vector<72x128xbf16>
    %c0_8 = arith.constant 0 : index
    %c24 = arith.constant 24 : index
    %c0_9 = arith.constant 0 : index
    %11 = vector.load %arg7[%c0_8, %c24, %c0_9] : memref<1x128x128xbf16, #tpu.memory_space<vmem>>, vector<1x72x128xbf16>
    %12 = vector.shape_cast %11 : vector<1x72x128xbf16> to vector<72x128xbf16>
    %13 = vector.shape_cast %10 : vector<72x128xbf16> to vector<1x72x128xbf16>
    tpu.vector_store %arg7[%c0_8, %c24, %c0_9], %13 {strides = array<i32>} : memref<1x128x128xbf16, #tpu.memory_space<vmem>>, vector<1x72x128xbf16>,
    %14 = vector.extract_strided_slice %10 {offsets = [53, 0], sizes = [19, 96], strides = [1, 1]} : vector<72x128xbf16> to vector<19x96xbf16>
    %15 = tpu.concatenate %0, %14 in 1 : vector<19x32xbf16>, vector<19x96xbf16> -> vector<19x128xbf16>
    %c0_10 = arith.constant 0 : index
    %c5 = arith.constant 5 : index
    %c0_11 = arith.constant 0 : index
    %16 = vector.load %arg7[%c0_10, %c5, %c0_11] : memref<1x128x128xbf16, #tpu.memory_space<vmem>>, vector<1x19x128xbf16>
    %17 = vector.shape_cast %16 : vector<1x19x128xbf16> to vector<19x128xbf16>
    %18 = vector.shape_cast %15 : vector<19x128xbf16> to vector<1x19x128xbf16>
    tpu.vector_store %arg7[%c0_10, %c5, %c0_11], %18 {strides = array<i32>} : memref<1x128x128xbf16, #tpu.memory_space<vmem>>, vector<1x19x128xbf16>,
    %19 = vector.extract_strided_slice %10 {offsets = [0, 32], sizes = [19, 96], strides = [1, 1]} : vector<72x128xbf16> to vector<19x96xbf16>
    %20 = tpu.concatenate %19, %0 in 1 : vector<19x96xbf16>, vector<19x32xbf16> -> vector<19x128xbf16>
    %c0_12 = arith.constant 0 : index
    %c96 = arith.constant 96 : index
    %c0_13 = arith.constant 0 : index
    %21 = vector.load %arg7[%c0_12, %c96, %c0_13] : memref<1x128x128xbf16, #tpu.memory_space<vmem>>, vector<1x19x128xbf16>
    %22 = vector.shape_cast %21 : vector<1x19x128xbf16> to vector<19x128xbf16>
    %23 = vector.shape_cast %20 : vector<19x128xbf16> to vector<1x19x128xbf16>
    tpu.vector_store %arg7[%c0_12, %c96, %c0_13], %23 {strides = array<i32>} : memref<1x128x128xbf16, #tpu.memory_space<vmem>>, vector<1x19x128xbf16>,
    %c0_14 = arith.constant 0 : index
    %c5_15 = arith.constant 5 : index
    %c0_16 = arith.constant 0 : index
    %24 = vector.load %arg7[%c0_14, %c5_15, %c0_16] : memref<1x128x128xbf16, #tpu.memory_space<vmem>>, vector<1x72x128xbf16>
    %25 = vector.shape_cast %24 : vector<1x72x128xbf16> to vector<72x128xbf16>
    %c0_17 = arith.constant 0 : index
    %c0_18 = arith.constant 0 : index
    %c0_19 = arith.constant 0 : index
    %26 = vector.load %arg3[%c0_17, %c0_18, %c0_19] : memref<9x128x128xbf16, #tpu.memory_space<vmem>>, vector<1x128x128xbf16>
    %27 = vector.shape_cast %26 : vector<1x128x128xbf16> to vector<128x128xbf16>
    %cst_20 = arith.constant dense<0.000000e+00> : vector<72x128xf32>
    %28 = tpu.matmul %25, %27, %cst_20 {dimension_numbers = #tpu.dot_dimension_numbers<[1], [0], [0], [1], [0, 0, 1, 1], [], []>} : vector<72x128xbf16>, vector<128x128xbf16>, vector<72x128xf32> -> vector<72x128xf32>
    %29 = arith.addf %3, %28 : vector<72x128xf32>
    %c0_21 = arith.constant 0 : index
    %c6 = arith.constant 6 : index
    %c0_22 = arith.constant 0 : index
    %30 = vector.load %arg7[%c0_21, %c6, %c0_22] : memref<1x128x128xbf16, #tpu.memory_space<vmem>>, vector<1x72x128xbf16>
    %31 = vector.shape_cast %30 : vector<1x72x128xbf16> to vector<72x128xbf16>
    %c1 = arith.constant 1 : index
    %c0_23 = arith.constant 0 : index
    %c0_24 = arith.constant 0 : index
    %32 = vector.load %arg3[%c1, %c0_23, %c0_24] : memref<9x128x128xbf16, #tpu.memory_space<vmem>>, vector<1x128x128xbf16>
    %33 = vector.shape_cast %32 : vector<1x128x128xbf16> to vector<128x128xbf16>
    %cst_25 = arith.constant dense<0.000000e+00> : vector<72x128xf32>
    %34 = tpu.matmul %31, %33, %cst_25 {dimension_numbers = #tpu.dot_dimension_numbers<[1], [0], [0], [1], [0, 0, 1, 1], [], []>} : vector<72x128xbf16>, vector<128x128xbf16>, vector<72x128xf32> -> vector<72x128xf32>
    %35 = arith.addf %29, %34 : vector<72x128xf32>
    %c0_26 = arith.constant 0 : index
    %c7 = arith.constant 7 : index
    %c0_27 = arith.constant 0 : index
    %36 = vector.load %arg7[%c0_26, %c7, %c0_27] : memref<1x128x128xbf16, #tpu.memory_space<vmem>>, vector<1x72x128xbf16>
    %37 = vector.shape_cast %36 : vector<1x72x128xbf16> to vector<72x128xbf16>
    %c2 = arith.constant 2 : index
    %c0_28 = arith.constant 0 : index
    %c0_29 = arith.constant 0 : index
    %38 = vector.load %arg3[%c2, %c0_28, %c0_29] : memref<9x128x128xbf16, #tpu.memory_space<vmem>>, vector<1x128x128xbf16>
    %39 = vector.shape_cast %38 : vector<1x128x128xbf16> to vector<128x128xbf16>
    %cst_30 = arith.constant dense<0.000000e+00> : vector<72x128xf32>
    %40 = tpu.matmul %37, %39, %cst_30 {dimension_numbers = #tpu.dot_dimension_numbers<[1], [0], [0], [1], [0, 0, 1, 1], [], []>} : vector<72x128xbf16>, vector<128x128xbf16>, vector<72x128xf32> -> vector<72x128xf32>
    %41 = arith.addf %35, %40 : vector<72x128xf32>
    %c0_31 = arith.constant 0 : index
    %c23 = arith.constant 23 : index
    %c0_32 = arith.constant 0 : index
    %42 = vector.load %arg7[%c0_31, %c23, %c0_32] : memref<1x128x128xbf16, #tpu.memory_space<vmem>>, vector<1x72x128xbf16>
    %43 = vector.shape_cast %42 : vector<1x72x128xbf16> to vector<72x128xbf16>
    %c3 = arith.constant 3 : index
    %c0_33 = arith.constant 0 : index
    %c0_34 = arith.constant 0 : index
    %44 = vector.load %arg3[%c3, %c0_33, %c0_34] : memref<9x128x128xbf16, #tpu.memory_space<vmem>>, vector<1x128x128xbf16>
    %45 = vector.shape_cast %44 : vector<1x128x128xbf16> to vector<128x128xbf16>
    %cst_35 = arith.constant dense<0.000000e+00> : vector<72x128xf32>
    %46 = tpu.matmul %43, %45, %cst_35 {dimension_numbers = #tpu.dot_dimension_numbers<[1], [0], [0], [1], [0, 0, 1, 1], [], []>} : vector<72x128xbf16>, vector<128x128xbf16>, vector<72x128xf32> -> vector<72x128xf32>
    %47 = arith.addf %41, %46 : vector<72x128xf32>
    %c0_36 = arith.constant 0 : index
    %c24_37 = arith.constant 24 : index
    %c0_38 = arith.constant 0 : index
    %48 = vector.load %arg7[%c0_36, %c24_37, %c0_38] : memref<1x128x128xbf16, #tpu.memory_space<vmem>>, vector<1x72x128xbf16>
    %49 = vector.shape_cast %48 : vector<1x72x128xbf16> to vector<72x128xbf16>
    %c4 = arith.constant 4 : index
    %c0_39 = arith.constant 0 : index
    %c0_40 = arith.constant 0 : index
    %50 = vector.load %arg3[%c4, %c0_39, %c0_40] : memref<9x128x128xbf16, #tpu.memory_space<vmem>>, vector<1x128x128xbf16>
    %51 = vector.shape_cast %50 : vector<1x128x128xbf16> to vector<128x128xbf16>
    %cst_41 = arith.constant dense<0.000000e+00> : vector<72x128xf32>
    %52 = tpu.matmul %49, %51, %cst_41 {dimension_numbers = #tpu.dot_dimension_numbers<[1], [0], [0], [1], [0, 0, 1, 1], [], []>} : vector<72x128xbf16>, vector<128x128xbf16>, vector<72x128xf32> -> vector<72x128xf32>
    %53 = arith.addf %47, %52 : vector<72x128xf32>
    %c0_42 = arith.constant 0 : index
    %c25 = arith.constant 25 : index
    %c0_43 = arith.constant 0 : index
    %54 = vector.load %arg7[%c0_42, %c25, %c0_43] : memref<1x128x128xbf16, #tpu.memory_space<vmem>>, vector<1x72x128xbf16>
    %55 = vector.shape_cast %54 : vector<1x72x128xbf16> to vector<72x128xbf16>
    %c5_44 = arith.constant 5 : index
    %c0_45 = arith.constant 0 : index
    %c0_46 = arith.constant 0 : index
    %56 = vector.load %arg3[%c5_44, %c0_45, %c0_46] : memref<9x128x128xbf16, #tpu.memory_space<vmem>>, vector<1x128x128xbf16>
    %57 = vector.shape_cast %56 : vector<1x128x128xbf16> to vector<128x128xbf16>
    %cst_47 = arith.constant dense<0.000000e+00> : vector<72x128xf32>
    %58 = tpu.matmul %55, %57, %cst_47 {dimension_numbers = #tpu.dot_dimension_numbers<[1], [0], [0], [1], [0, 0, 1, 1], [], []>} : vector<72x128xbf16>, vector<128x128xbf16>, vector<72x128xf32> -> vector<72x128xf32>
    %59 = arith.addf %53, %58 : vector<72x128xf32>
    %c0_48 = arith.constant 0 : index
    %c41 = arith.constant 41 : index
    %c0_49 = arith.constant 0 : index
    %60 = vector.load %arg7[%c0_48, %c41, %c0_49] : memref<1x128x128xbf16, #tpu.memory_space<vmem>>, vector<1x72x128xbf16>
    %61 = vector.shape_cast %60 : vector<1x72x128xbf16> to vector<72x128xbf16>
    %c6_50 = arith.constant 6 : index
    %c0_51 = arith.constant 0 : index
    %c0_52 = arith.constant 0 : index
    %62 = vector.load %arg3[%c6_50, %c0_51, %c0_52] : memref<9x128x128xbf16, #tpu.memory_space<vmem>>, vector<1x128x128xbf16>
    %63 = vector.shape_cast %62 : vector<1x128x128xbf16> to vector<128x128xbf16>
    %cst_53 = arith.constant dense<0.000000e+00> : vector<72x128xf32>
    %64 = tpu.matmul %61, %63, %cst_53 {dimension_numbers = #tpu.dot_dimension_numbers<[1], [0], [0], [1], [0, 0, 1, 1], [], []>} : vector<72x128xbf16>, vector<128x128xbf16>, vector<72x128xf32> -> vector<72x128xf32>
    %65 = arith.addf %59, %64 : vector<72x128xf32>
    %c0_54 = arith.constant 0 : index
    %c42 = arith.constant 42 : index
    %c0_55 = arith.constant 0 : index
    %66 = vector.load %arg7[%c0_54, %c42, %c0_55] : memref<1x128x128xbf16, #tpu.memory_space<vmem>>, vector<1x72x128xbf16>
    %67 = vector.shape_cast %66 : vector<1x72x128xbf16> to vector<72x128xbf16>
    %c7_56 = arith.constant 7 : index
    %c0_57 = arith.constant 0 : index
    %c0_58 = arith.constant 0 : index
    %68 = vector.load %arg3[%c7_56, %c0_57, %c0_58] : memref<9x128x128xbf16, #tpu.memory_space<vmem>>, vector<1x128x128xbf16>
    %69 = vector.shape_cast %68 : vector<1x128x128xbf16> to vector<128x128xbf16>
    %cst_59 = arith.constant dense<0.000000e+00> : vector<72x128xf32>
    %70 = tpu.matmul %67, %69, %cst_59 {dimension_numbers = #tpu.dot_dimension_numbers<[1], [0], [0], [1], [0, 0, 1, 1], [], []>} : vector<72x128xbf16>, vector<128x128xbf16>, vector<72x128xf32> -> vector<72x128xf32>
    %71 = arith.addf %65, %70 : vector<72x128xf32>
    %c0_60 = arith.constant 0 : index
    %c43 = arith.constant 43 : index
    %c0_61 = arith.constant 0 : index
    %72 = vector.load %arg7[%c0_60, %c43, %c0_61] : memref<1x128x128xbf16, #tpu.memory_space<vmem>>, vector<1x72x128xbf16>
    %73 = vector.shape_cast %72 : vector<1x72x128xbf16> to vector<72x128xbf16>
    %c8 = arith.constant 8 : index
    %c0_62 = arith.constant 0 : index
    %c0_63 = arith.constant 0 : index
    %74 = vector.load %arg3[%c8, %c0_62, %c0_63] : memref<9x128x128xbf16, #tpu.memory_space<vmem>>, vector<1x128x128xbf16>
    %75 = vector.shape_cast %74 : vector<1x128x128xbf16> to vector<128x128xbf16>
    %cst_64 = arith.constant dense<0.000000e+00> : vector<72x128xf32>
    %76 = tpu.matmul %73, %75, %cst_64 {dimension_numbers = #tpu.dot_dimension_numbers<[1], [0], [0], [1], [0, 0, 1, 1], [], []>} : vector<72x128xbf16>, vector<128x128xbf16>, vector<72x128xf32> -> vector<72x128xf32>
    %77 = arith.addf %71, %76 : vector<72x128xf32>
    %78 = arith.mulf %77, %77 : vector<72x128xf32>
    %79 = arith.truncf %78 : vector<72x128xf32> to vector<72x128xbf16>
    %c0_65 = arith.constant 0 : index
    %c0_66 = arith.constant 0 : index
    %80 = vector.load %arg5[%c0_65, %c0_66] : memref<128x128xbf16, #tpu.memory_space<vmem>>, vector<128x128xbf16>
    %cst_67 = arith.constant dense<0.000000e+00> : vector<72x128xf32>
    %81 = tpu.matmul %79, %80, %cst_67 {dimension_numbers = #tpu.dot_dimension_numbers<[1], [0], [0], [1], [0, 0, 1, 1], [], []>} : vector<72x128xbf16>, vector<128x128xbf16>, vector<72x128xf32> -> vector<72x128xf32>
    %cst_68 = arith.constant 2.000000e-05 : f32
    %82 = vector.broadcast %cst_68 : f32 to vector<72x128xf32>
    %83 = arith.mulf %82, %81 : vector<72x128xf32>
    %cst_69 = arith.constant 1.000000e+00 : f32
    %84 = vector.broadcast %cst_69 : f32 to vector<72x128xf32>
    %85 = arith.addf %84, %83 : vector<72x128xf32>
    %86 = math.log %85 : vector<72x128xf32>
    %cst_70 = arith.constant -7.500000e-01 : f32
    %87 = vector.broadcast %cst_70 : f32 to vector<72x128xf32>
    %88 = arith.mulf %87, %86 : vector<72x128xf32>
    %89 = math.exp %88 : vector<72x128xf32>
    %90 = arith.mulf %77, %89 : vector<72x128xf32>
    %91 = arith.truncf %90 : vector<72x128xf32> to vector<72x128xbf16>
    %c0_71 = arith.constant 0 : index
    %c0_72 = arith.constant 0 : index
    %c0_73 = arith.constant 0 : index
    %92 = vector.load %arg6[%c0_71, %c0_72, %c0_73] : memref<1x72x128xbf16, #tpu.memory_space<vmem>>, vector<1x72x128xbf16>
    %93 = vector.shape_cast %92 : vector<1x72x128xbf16> to vector<72x128xbf16>
    %94 = vector.shape_cast %91 : vector<72x128xbf16> to vector<1x72x128xbf16>
    tpu.vector_store %arg6[%c0_71, %c0_72, %c0_73], %94 {strides = array<i32>} : memref<1x72x128xbf16, #tpu.memory_space<vmem>>, vector<1x72x128xbf16>,
    return
  }
  func.func @transform_0(%arg0: i32) -> (i32, i32, i32) {
    %c0_i32 = arith.constant 0 : i32
    %c0_i32_0 = arith.constant 0 : i32
    %c0_i32_1 = arith.constant 0 : i32
    return %arg0, %c0_i32, %c0_i32_0 : i32, i32, i32
  }
  func.func @transform_1(%arg0: i32) -> (i32, i32) {
    %c0_i32 = arith.constant 0 : i32
    %c0_i32_0 = arith.constant 0 : i32
    %c0_i32_1 = arith.constant 0 : i32
    return %c0_i32, %c0_i32_0 : i32, i32
  }
  func.func @transform_2(%arg0: i32) -> (i32, i32, i32) {
    %c0_i32 = arith.constant 0 : i32
    %c0_i32_0 = arith.constant 0 : i32
    %c0_i32_1 = arith.constant 0 : i32
    %c0_i32_2 = arith.constant 0 : i32
    return %c0_i32, %c0_i32_0, %c0_i32_1 : i32, i32, i32
  }
  func.func @transform_3(%arg0: i32) -> (i32, i32) {
    %c0_i32 = arith.constant 0 : i32
    %c0_i32_0 = arith.constant 0 : i32
    %c0_i32_1 = arith.constant 0 : i32
    return %c0_i32, %c0_i32_0 : i32, i32
  }
  func.func @transform_4(%arg0: i32) -> (i32, i32) {
    %c0_i32 = arith.constant 0 : i32
    %c0_i32_0 = arith.constant 0 : i32
    %c0_i32_1 = arith.constant 0 : i32
    return %c0_i32, %c0_i32_0 : i32, i32
  }
  func.func @transform_5(%arg0: i32) -> (i32, i32, i32) {
    %c0_i32 = arith.constant 0 : i32
    %c0_i32_0 = arith.constant 0 : i32
    %c0_i32_1 = arith.constant 0 : i32
    return %arg0, %c0_i32, %c0_i32_0 : i32, i32, i32
  }
}

</mosaic_0001>

<llo_original>
// kernel: dcfnet_feature.1
$region0: #{dcfnet_feature.1}
  #allocation0 [shape = 'u32[]', space=smem, size = 0x4, offset = 0x4, fixed_abs, tag = 'smem constant byte address 0x4 - core index']
  #allocation1 [shape = 'u32[144,128]{1,0:T(1,128)}', space=vmem, size = 0x12000, scoped, tag = 'internal scratch']
  #allocation2 [shape = 'bf16[1,128,128]{2,1,0:T(16,128)(2,1)}', space=vmem, size = 0x8000, scoped, tag = 'scratch operand']
  %s0 = inlined_call_operand.vmem [shape: bf16[2,72,128], index: 0, kind: input, shape index: {}]
  %s1 = inlined_call_operand.vmem [shape: bf16[128,128], index: 1, kind: input, shape index: {}]
  %s2 = inlined_call_operand.vmem [shape: bf16[9,128,128], index: 2, kind: input, shape index: {}]
  %s3 = inlined_call_operand.vmem [shape: f32[1,128], index: 3, kind: input, shape index: {}]
  %s4 = inlined_call_operand.vmem [shape: bf16[128,128], index: 4, kind: input, shape index: {}]
  %s5 = inlined_call_operand.vmem [shape: bf16[2,72,128], index: 5, kind: output, shape index: {}]
  %s6 = sld [smem:[#allocation0]]
  $region53: #{dcfnet_feature.1} parent=0
    _
  %s8 = ssub.s32 1, %s6
  %s9 = scalar_select 0, %s8, %s6
  loop: start=0, step=1, limit=4
  $region2: #{dcfnet_feature.1} parent=0 // loop_pre_header
    _
  $region3: #{dcfnet_feature.1} parent=0 // loop_header
    %s11 = sphi 0, %s15
    %p12 = scmp.ge.s32.totalorder %s11, 4
    %s21 = sphi 0, %s23
    %s24 = sphi 0, %s21
    %s25 = sphi 0, %s24
    %s41 = sphi 0, %s25
    %s45 = sphi 0, %s45
    %s47 = sphi 0, %s45
    %s48 = sphi 0, %s47
    %s62 = sphi 0, %s48
    %s66 = sphi 0, %s66
    %s68 = sphi 0, %s66
    %s69 = sphi 0, %s68
    %s83 = sphi 0, %s69
    %s87 = sphi 0, %s87
    %s89 = sphi 0, %s87
    %s90 = sphi 0, %s89
    %s104 = sphi 0, %s90
    %s108 = sphi 0, %s108
    %s110 = sphi 0, %s108
    %s111 = sphi 0, %s110
    %s125 = sphi 0, %s111
    %s131 = sphi 0, %s133
    %s134 = sphi 0, %s131
    %s135 = sphi 0, %s134
    %s151 = sphi 0, %s135
  $region4: #{dcfnet_feature.1} parent=0 // loop_header_branch
    %14 = sbr.rel (%p12) target = $region8
  $region5: #{dcfnet_feature.1} parent=0 // loop_body
    %s16 = ssub.s32 %s11, 1
    %s17 = ssub.s32 %s11, 2
    %s18 = sadd.s32 %s11, 1
    %s19 = ssub.s32 %s11, %s18
    %p20 = scmp.eq.s32.totalorder %s19, 0
    %s22 = sadd.s32 %s21, 1
    %s23 = scalar_select %p20, %s21, %s22
    %p26 = pneg %p20
    %p27 = scmp.eq.s32.totalorder %s11, 1
    %p28 = por %p26, %p27
    %p29 = scmp.ne.s32.totalorder %s21, %s24
    %p30 = scmp.eq.s32.totalorder %s11, 0
    %p31 = por %p29, %p30
    %p32 = scmp.ne.s32.totalorder %s21, %s24
    %p33 = scmp.eq.s32.totalorder %s16, 1
    %p34 = por %p32, %p33
    %p35 = scmp.ne.s32.totalorder %s24, %s25
    %p36 = scmp.eq.s32.totalorder %s16, 0
    %p37 = por %p35, %p36
    %p38 = scmp.ne.s32.totalorder %s24, %s25
    %p39 = scmp.eq.s32.totalorder %s17, 1
    %p40 = por %p38, %p39
    %p42 = scmp.ne.s32.totalorder %s25, %s41
    %p43 = scmp.eq.s32.totalorder %s17, 0
    %p44 = por %p42, %p43
    %s46 = sadd.s32 %s45, 1
    %p49 = scmp.eq.s32.totalorder %s11, 1
    %p50 = scmp.ne.s32.totalorder %s45, %s47
    %p51 = scmp.eq.s32.totalorder %s11, 0
    %p52 = por %p50, %p51
    %p53 = scmp.ne.s32.totalorder %s45, %s47
    %p54 = scmp.eq.s32.totalorder %s16, 1
    %p55 = por %p53, %p54
    %p56 = scmp.ne.s32.totalorder %s47, %s48
    %p57 = scmp.eq.s32.totalorder %s16, 0
    %p58 = por %p56, %p57
    %p59 = scmp.ne.s32.totalorder %s47, %s48
    %p60 = scmp.eq.s32.totalorder %s17, 1
    %p61 = por %p59, %p60
    %p63 = scmp.ne.s32.totalorder %s48, %s62
    %p64 = scmp.eq.s32.totalorder %s17, 0
    %p65 = por %p63, %p64
    %s67 = sadd.s32 %s66, 1
    %p70 = scmp.eq.s32.totalorder %s11, 1
    %p71 = scmp.ne.s32.totalorder %s66, %s68
    %p72 = scmp.eq.s32.totalorder %s11, 0
    %p73 = por %p71, %p72
    %p74 = scmp.ne.s32.totalorder %s66, %s68
    %p75 = scmp.eq.s32.totalorder %s16, 1
    %p76 = por %p74, %p75
    %p77 = scmp.ne.s32.totalorder %s68, %s69
    %p78 = scmp.eq.s32.totalorder %s16, 0
    %p79 = por %p77, %p78
    %p80 = scmp.ne.s32.totalorder %s68, %s69
    %p81 = scmp.eq.s32.totalorder %s17, 1
    %p82 = por %p80, %p81
    %p84 = scmp.ne.s32.totalorder %s69, %s83
    %p85 = scmp.eq.s32.totalorder %s17, 0
    %p86 = por %p84, %p85
    %s88 = sadd.s32 %s87, 1
    %p91 = scmp.eq.s32.totalorder %s11, 1
    %p92 = scmp.ne.s32.totalorder %s87, %s89
    %p93 = scmp.eq.s32.totalorder %s11, 0
    %p94 = por %p92, %p93
    %p95 = scmp.ne.s32.totalorder %s87, %s89
    %p96 = scmp.eq.s32.totalorder %s16, 1
    %p97 = por %p95, %p96
    %p98 = scmp.ne.s32.totalorder %s89, %s90
    %p99 = scmp.eq.s32.totalorder %s16, 0
    %p100 = por %p98, %p99
    %p101 = scmp.ne.s32.totalorder %s89, %s90
    %p102 = scmp.eq.s32.totalorder %s17, 1
    %p103 = por %p101, %p102
    %p105 = scmp.ne.s32.totalorder %s90, %s104
    %p106 = scmp.eq.s32.totalorder %s17, 0
    %p107 = por %p105, %p106
    %s109 = sadd.s32 %s108, 1
    %p112 = scmp.eq.s32.totalorder %s11, 1
    %p113 = scmp.ne.s32.totalorder %s108, %s110
    %p114 = scmp.eq.s32.totalorder %s11, 0
    %p115 = por %p113, %p114
    %p116 = scmp.ne.s32.totalorder %s108, %s110
    %p117 = scmp.eq.s32.totalorder %s16, 1
    %p118 = por %p116, %p117
    %p119 = scmp.ne.s32.totalorder %s110, %s111
    %p120 = scmp.eq.s32.totalorder %s16, 0
    %p121 = por %p119, %p120
    %p122 = scmp.ne.s32.totalorder %s110, %s111
    %p123 = scmp.eq.s32.totalorder %s17, 1
    %p124 = por %p122, %p123
    %p126 = scmp.ne.s32.totalorder %s111, %s125
    %p127 = scmp.eq.s32.totalorder %s17, 0
    %p128 = por %p126, %p127
    %s129 = ssub.s32 %s11, %s18
    %p130 = scmp.eq.s32.totalorder %s129, 0
    %s132 = sadd.s32 %s131, 1
    %s133 = scalar_select %p130, %s131, %s132
    %p136 = pneg %p130
    %p137 = scmp.eq.s32.totalorder %s11, 1
    %p138 = por %p136, %p137
    %p139 = scmp.ne.s32.totalorder %s131, %s134
    %p140 = scmp.eq.s32.totalorder %s11, 0
    %p141 = por %p139, %p140
    %p142 = scmp.ne.s32.totalorder %s131, %s134
    %p143 = scmp.eq.s32.totalorder %s16, 1
    %p144 = por %p142, %p143
    %p145 = scmp.ne.s32.totalorder %s134, %s135
    %p146 = scmp.eq.s32.totalorder %s16, 0
    %p147 = por %p145, %p146
    %p148 = scmp.ne.s32.totalorder %s134, %s135
    %p149 = scmp.eq.s32.totalorder %s17, 1
    %p150 = por %p148, %p149
    %p152 = scmp.ne.s32.totalorder %s135, %s151
    %p153 = scmp.eq.s32.totalorder %s17, 0
    %p154 = por %p152, %p153
    %p155 = scmp.le.s32.totalorder 1, %s11
    %p156 = scmp.lt.s32.totalorder %s11, 3
    %p157 = pnand %p155, %p156
    %p158 = pneg %p157
    // Predicated region
    $region9: #{dcfnet_feature.1} parent=5 // pred_check
      _
    $region10: #{dcfnet_feature.1} parent=5 // pred_check_branch
      %160 = sbr.rel (%p157) target = $region12
    $region11: #{dcfnet_feature.1} parent=5 // pred_region
      %s161 = ssub.s32 %s11, 1
      // Predicated region
      $region13: #{dcfnet_feature.1} parent=11 // pred_check
        %p162 = pneg %p58
      $region14: #{dcfnet_feature.1} parent=11 // pred_check_branch
        %164 = sbr.rel (%p162) target = $region16
      $region15: #{dcfnet_feature.1} parent=11 // pred_region
        _
      $region16: #{dcfnet_feature.1} parent=11 // pred_fallthru
        _
      // Predicated region
      $region17: #{dcfnet_feature.1} parent=11 // pred_check
        %p165 = pneg %p79
      $region18: #{dcfnet_feature.1} parent=11 // pred_check_branch
        %167 = sbr.rel (%p165) target = $region20
      $region19: #{dcfnet_feature.1} parent=11 // pred_region
        _
      $region20: #{dcfnet_feature.1} parent=11 // pred_fallthru
        _
      // Predicated region
      $region21: #{dcfnet_feature.1} parent=11 // pred_check
        %p168 = pneg %p100
      $region22: #{dcfnet_feature.1} parent=11 // pred_check_branch
        %170 = sbr.rel (%p168) target = $region24
      $region23: #{dcfnet_feature.1} parent=11 // pred_region
        _
      $region24: #{dcfnet_feature.1} parent=11 // pred_fallthru
        _
      // Predicated region
      $region25: #{dcfnet_feature.1} parent=11 // pred_check
        %p171 = pneg %p121
      $region26: #{dcfnet_feature.1} parent=11 // pred_check_branch
        %173 = sbr.rel (%p171) target = $region28
      $region27: #{dcfnet_feature.1} parent=11 // pred_region
        _
      $region28: #{dcfnet_feature.1} parent=11 // pred_fallthru
        _
    $region12: #{dcfnet_feature.1} parent=5 // pred_fallthru
      _
    %p174 = scmp.lt.s32.totalorder %s11, 2
    // Predicated region
    $region29: #{dcfnet_feature.1} parent=5 // pred_check
      %p175 = pneg %p174
    $region30: #{dcfnet_feature.1} parent=5 // pred_check_branch
      %177 = sbr.rel (%p175) target = $region32
    $region31: #{dcfnet_feature.1} parent=5 // pred_region
      // Predicated region
      $region33: #{dcfnet_feature.1} parent=31 // pred_check
        %p178 = pneg %p31
      $region34: #{dcfnet_feature.1} parent=31 // pred_check_branch
        %180 = sbr.rel (%p178) target = $region36
      $region35: #{dcfnet_feature.1} parent=31 // pred_region
        %p181 = scmp.lt.s32.totalorder %s11, 1
        %s182 = scalar_select %p181, %s11, 1
        %s183 = smul.addr %s182, 9
        %s184 = smul.addr %s183, 4
        %s185 = scalar_lea.vmem %s0, %s184
      $region36: #{dcfnet_feature.1} parent=31 // pred_fallthru
        _
    $region32: #{dcfnet_feature.1} parent=5 // pred_fallthru
      _
    %p186 = scmp.le.s32.totalorder 1, %s11
    %p187 = scmp.lt.s32.totalorder %s11, 3
    %p188 = pnand %p186, %p187
    %p189 = pneg %p188
    // Predicated region
    $region37: #{dcfnet_feature.1} parent=5 // pred_check
      _
    $region38: #{dcfnet_feature.1} parent=5 // pred_check_branch
      %191 = sbr.rel (%p188) target = $region40
    $region39: #{dcfnet_feature.1} parent=5 // pred_region
      %s192 = ssub.s32 %s11, 1
      %p193 = scmp.lt.s32.totalorder %s16, 1
      %s194 = scalar_select %p193, %s16, 1
      %s195 = smul.addr %s194, 9
      %s196 = smul.addr %s195, 4
      %s197 = scalar_lea.vmem %s0, %s196
      %p198 = pneg %p37
      %p199 = pneg %p34
      %p200 = pneg %p58
      %p201 = pneg %p55
      %p202 = pneg %p79
      %p203 = pneg %p76
      %p204 = pneg %p100
      %p205 = pneg %p97
      %p206 = pneg %p121
      %p207 = pneg %p118
      %p208 = pneg %p147
      %p209 = pneg %p144
      %p210 = scmp.lt.s32.totalorder %s16, 1
      %s211 = scalar_select %p210, %s16, 1
      %s212 = smul.addr %s211, 9
      %s213 = smul.addr %s212, 4
      %s214 = scalar_lea.vmem %s5, %s213
      %p215 = scmp.lt.s32.totalorder %s16, 1
      %s216 = scalar_select %p215, %s16, 1
      %s217 = smul.addr %s216, 9
      %s218 = smul.addr %s217, 4
      %s219 = scalar_lea.vmem %s0, %s218
      %p220 = scmp.lt.s32.totalorder %s16, 1
      %s221 = scalar_select %p220, %s16, 1
      %s222 = smul.addr %s221, 9
      %s223 = smul.addr %s222, 4
      %s224 = scalar_lea.vmem %s5, %s223
      %v226 = vld [vmem:[%s3] sm:$0x1]
      %v228 = vlaneseq
      %v229 = vshrl.u32 %v228, 7
      %v230 = vsub.s32 0, %v229
      %v231 = vrot.slane %v226, %v230
      %v233 = vld [vmem:[%s219] sm:$0xf]
      %v234 = vld [vmem:[%s219 + $0x4] sm:$0xf]
      %v235 = vld [vmem:[%s219 + $0x8] sm:$0xf]
      %v236 = vld [vmem:[%s219 + $0xc] sm:$0xf]
      %v237 = vld [vmem:[%s219 + $0x10] sm:$0xf]
      %v238 = vld [vmem:[%s219 + $0x14] sm:$0xf]
      %v239 = vld [vmem:[%s219 + $0x18] sm:$0xf]
      %v240 = vld [vmem:[%s219 + $0x1c] sm:$0xf]
      %v241 = vld [vmem:[%s219 + $0x20] sm:$0xf]
      %v242 = vld [vmem:[%s1] sm:$0xf]
      %v243 = vld [vmem:[%s1 + $0x4] sm:$0xf]
      %v244 = vld [vmem:[%s1 + $0x8] sm:$0xf]
      %v245 = vld [vmem:[%s1 + $0xc] sm:$0xf]
      %v246 = vld [vmem:[%s1 + $0x10] sm:$0xf]
      %v247 = vld [vmem:[%s1 + $0x14] sm:$0xf]
      %v248 = vld [vmem:[%s1 + $0x18] sm:$0xf]
      %v249 = vld [vmem:[%s1 + $0x1c] sm:$0xf]
      %v250 = vld [vmem:[%s1 + $0x20] sm:$0xf]
      %v251 = vld [vmem:[%s1 + $0x24] sm:$0xf]
      %v252 = vld [vmem:[%s1 + $0x28] sm:$0xf]
      %v253 = vld [vmem:[%s1 + $0x2c] sm:$0xf]
      %v254 = vld [vmem:[%s1 + $0x30] sm:$0xf]
      %v255 = vld [vmem:[%s1 + $0x34] sm:$0xf]
      %v256 = vld [vmem:[%s1 + $0x38] sm:$0xf]
      %v257 = vld [vmem:[%s1 + $0x3c] sm:$0xf]
      %v267 = vunpack.c.l.b16 %v233
      %v268 = vunpack.c.l.b16 %v234
      %v269 = vunpack.c.l.b16 %v235
      %v270 = vunpack.c.l.b16 %v236
      %v271 = vunpack.c.l.b16 %v237
      %v272 = vunpack.c.l.b16 %v238
      %v273 = vunpack.c.l.b16 %v239
      %v274 = vunpack.c.l.b16 %v240
      %v275 = vunpack.c.l.b16 %v241
      %v276 = vpack.c.b16 %v268, %v267
      %v277 = vpack.c.b16 %v270, %v269
      %v278 = vpack.c.b16 %v272, %v271
      %v279 = vpack.c.b16 %v274, %v273
      %v280 = vpack.c.b16 %v275, %v275
      %v302 = vunpack.c.l.b16 %v242
      %v303 = vunpack.c.l.b16 %v243
      %v304 = vunpack.c.l.b16 %v244
      %v305 = vunpack.c.l.b16 %v245
      %v306 = vunpack.c.l.b16 %v246
      %v307 = vunpack.c.l.b16 %v247
      %v308 = vunpack.c.l.b16 %v248
      %v309 = vunpack.c.l.b16 %v249
      %v310 = vunpack.c.l.b16 %v250
      %v311 = vunpack.c.l.b16 %v251
      %v312 = vunpack.c.l.b16 %v252
      %v313 = vunpack.c.l.b16 %v253
      %v314 = vunpack.c.l.b16 %v254
      %v315 = vunpack.c.l.b16 %v255
      %v316 = vunpack.c.l.b16 %v256
      %v317 = vunpack.c.l.b16 %v257
      %v318 = vpack.c.b16 %v303, %v302
      %v319 = vpack.c.b16 %v305, %v304
      %v320 = vpack.c.b16 %v307, %v306
      %v321 = vpack.c.b16 %v309, %v308
      %v322 = vpack.c.b16 %v311, %v310
      %v323 = vpack.c.b16 %v313, %v312
      %v324 = vpack.c.b16 %v315, %v314
      %v325 = vpack.c.b16 %v317, %v316
      %334 = vmatprep.subr.bf16.mxu0 0
      %335 = vmatpush1.bf16.msra.mxu0 %v318
      %336 = vmatprep.subr.bf16.mxu0 0
      %337 = vmatpush1.bf16.msra.mxu0 %v319
      %338 = vmatprep.subr.bf16.mxu0 0
      %339 = vmatpush1.bf16.msra.mxu0 %v320
      %340 = vmatprep.subr.bf16.mxu0 0
      %341 = vmatpush1.bf16.msra.mxu0 %v321
      %342 = vmatprep.subr.bf16.mxu0 0
      %343 = vmatpush1.bf16.msra.mxu0 %v322
      %344 = vmatprep.subr.bf16.mxu0 0
      %345 = vmatpush1.bf16.msra.mxu0 %v323
      %346 = vmatprep.subr.bf16.mxu0 0
      %347 = vmatpush1.bf16.msra.mxu0 %v324
      %348 = vmatprep.subr.bf16.mxu0 0
      %349 = vmatpush1.bf16.msra.mxu0 %v325
      %350 = vmatprep.subr.bf16.mxu0 0
      %351 = vmatpush1.bf16.msra.mxu0 0
      %352 = vmatprep.subr.bf16.mxu0 0
      %353 = vmatpush1.bf16.msra.mxu0 0
      %354 = vmatprep.subr.bf16.mxu0 0
      %355 = vmatpush1.bf16.msra.mxu0 0
      %356 = vmatprep.subr.bf16.mxu0 0
      %357 = vmatpush1.bf16.msra.mxu0 0
      %358 = vmatprep.subr.bf16.mxu0 0
      %359 = vmatpush1.bf16.msra.mxu0 0
      %360 = vmatprep.subr.bf16.mxu0 0
      %361 = vmatpush1.bf16.msra.mxu0 0
      %362 = vmatprep.subr.bf16.mxu0 0
      %363 = vmatpush1.bf16.msra.mxu0 0
      %364 = vmatprep.subr.bf16.mxu0 0
      %365 = vmatpush1.bf16.msra.mxu0 0
      %366 = vmatprep.mubr.bf16.mxu0 0
      %367 = vmatmul.mubr.bf16.gmra.mrb[0].mxu0 %v276
      %v368 = vpop.f32.mrb[0].mxu0
      %v369 = vadd.f32 0.0, %v368
      %v370 = vpop.f32.mrb[0].mxu0
      %v371 = vpop.f32.mrb[0].mxu0
      %v372 = vadd.f32 0.0, %v371
      %v373 = vpop.f32.mrb[0].mxu0
      %374 = vmatprep.mubr.bf16.mxu0 0
      %375 = vmatmul.mubr.bf16.gmra.mrb[0].mxu0 %v277
      %v376 = vpop.f32.mrb[0].mxu0
      %v377 = vadd.f32 0.0, %v376
      %v378 = vpop.f32.mrb[0].mxu0
      %v379 = vpop.f32.mrb[0].mxu0
      %v380 = vadd.f32 0.0, %v379
      %v381 = vpop.f32.mrb[0].mxu0
      %382 = vmatprep.mubr.bf16.mxu0 0
      %383 = vmatmul.mubr.bf16.gmra.mrb[0].mxu0 %v278
      %v384 = vpop.f32.mrb[0].mxu0
      %v385 = vadd.f32 0.0, %v384
      %v386 = vpop.f32.mrb[0].mxu0
      %v387 = vpop.f32.mrb[0].mxu0
      %v388 = vadd.f32 0.0, %v387
      %v389 = vpop.f32.mrb[0].mxu0
      %390 = vmatprep.mubr.bf16.mxu0 0
      %391 = vmatmul.mubr.bf16.gmra.mrb[0].mxu0 %v279
      %v392 = vpop.f32.mrb[0].mxu0
      %v393 = vadd.f32 0.0, %v392
      %v394 = vpop.f32.mrb[0].mxu0
      %v395 = vpop.f32.mrb[0].mxu0
      %v396 = vadd.f32 0.0, %v395
      %v397 = vpop.f32.mrb[0].mxu0
      %398 = vmatprep.mubr.bf16.mxu0 0
      %399 = vmatmul.mubr.bf16.gmra.mrb[0].mxu0 %v280
      %v400 = vpop.f32.mrb[0].mxu0
      %v401 = vadd.f32 0.0, %v400
      %v402 = vpop.f32.mrb[0].mxu0
      %v403 = vpop.f32.mrb[0].mxu0
      %v404 = vpop.f32.mrb[0].mxu0
      %405 = vdwg.mxu0
      %v406 = vmax.f32 %v369, 0.0
      %v407 = vmax.f32 %v372, 0.0
      %v408 = vmax.f32 %v377, 0.0
      %v409 = vmax.f32 %v380, 0.0
      %v410 = vmax.f32 %v385, 0.0
      %v411 = vmax.f32 %v388, 0.0
      %v412 = vmax.f32 %v393, 0.0
      %v413 = vmax.f32 %v396, 0.0
      %v414 = vmax.f32 %v401, 0.0
      %v415 = vpack.c.bf16 %v407, %v406
      %v416 = vpack.c.bf16 %v409, %v408
      %v417 = vpack.c.bf16 %v411, %v410
      %v418 = vpack.c.bf16 %v413, %v412
      %v419 = vpack.c.bf16 %v414, %v414
      %vm425 = vcmask 1043456
      %v426 = vrot.slane %v415, 4
      %v427 = vrot.slane %v416, 4
      %v428 = vsel %vm425, %v426, %v427
      %v429 = vrot.slane %v417, 4
      %v430 = vsel %vm425, %v427, %v429
      %v431 = vrot.slane %v418, 4
      %v432 = vsel %vm425, %v429, %v431
      %v433 = vrot.slane %v419, 4
      %v434 = vsel %vm425, %v431, %v433
      %440 = vst [vmem:[#allocation2 + $0x8] sm:$0xf0] %v426
      %441 = vst [vmem:[#allocation2 + $0x10] sm:$0xff] %v428
      %442 = vst [vmem:[#allocation2 + $0x18] sm:$0xff] %v430
      %443 = vst [vmem:[#allocation2 + $0x20] sm:$0xff] %v432
      %444 = vst [vmem:[#allocation2 + $0x28] sm:$0xff] %v434
      %vm445 = vsmask.f32 5376
      %v447 = vshrl.u32 %v418, 16
      %v449 = vrot.slane %v447, 2
      %v450 = vshll.u32 %v418, 16
      %v452 = vrot.slane %v450, 3
      %v453 = vor.u32 %v449, %v452
      %v455 = vshrl.u32 %v419, 16
      %v457 = vrot.slane %v455, 2
      %v458 = vshll.u32 %v419, 16
      %v460 = vrot.slane %v458, 3
      %v461 = vor.u32 %v457, %v460
      %v462 = vsel %vm445, %v453, %v461
      %463 = vrot.lane.b32.xlu0 %v462, 32
      %v464 = vpop.permute.xlu0 %463
      %465 = vrot.lane.b32.xlu0 %v461, 32
      %v466 = vpop.permute.xlu0 %465
      %vm467 = vcmask 261120
      %v470 = vsel %vm467, 0, %v464
      %v472 = vsel %vm467, 0, %v466
      %vm473 = vsmask.f32 2304
      %v474 = vshrl.u32 %v470, 16
      %v476 = vrot.slane %v474, 5
      %v477 = vshll.u32 %v470, 16
      %v479 = vrot.slane %v477, 6
      %v480 = vor.u32 %v476, %v479
      %v481 = vshrl.u32 %v472, 16
      %v483 = vrot.slane %v481, 5
      %v484 = vshll.u32 %v472, 16
      %v486 = vrot.slane %v484, 6
      %v487 = vor.u32 %v483, %v486
      %v488 = vsel %vm473, %v480, %v487
      %vm491 = vcmask 1047554
      %vm492 = vsmask.f32 7946
      %vm493 = vmand %vm491, %vm492
      %v494 = vld [vmem:[#allocation2] sm:$0xfc]
      %v495 = vsel %vm493, %v480, %v494
      %496 = vst [vmem:[#allocation2] sm:$0xfc] %v495
      %497 = vst [vmem:[#allocation2 + $0x8] sm:$0xf] %v488
      %498 = vrot.lane.b32.xlu0 %v415, 96
      %v499 = vpop.permute.xlu0 %498
      %500 = vrot.lane.b32.xlu0 %v416, 96
      %v501 = vpop.permute.xlu0 %500
      %vm502 = vcmask 785408
      %v504 = vsel %vm502, %v499, 0
      %v507 = vsel %vm502, %v501, 0
      %509 = vst [vmem:[#allocation2 + $0x30] sm:$0xff] %v504
      %vm510 = vcmask 1041408
      %vm511 = vsmask.f32 1280
      %vm512 = vmand %vm510, %vm511
      %v513 = vld [vmem:[#allocation2 + $0x38] sm:$0x3]
      %v514 = vsel %vm512, %v507, %v513
      %515 = vst [vmem:[#allocation2 + $0x38] sm:$0x3] %v514
      %v516 = vld [vmem:[#allocation2] sm:$0xfc]
      %v517 = vld [vmem:[#allocation2 + $0x8] sm:$0xff]
      %v518 = vld [vmem:[#allocation2 + $0x10] sm:$0xff]
      %v519 = vld [vmem:[#allocation2 + $0x18] sm:$0xff]
      %v520 = vld [vmem:[#allocation2 + $0x20] sm:$0x7f]
      %v521 = vld [vmem:[%s2] sm:$0xf]
      %v522 = vld [vmem:[%s2 + $0x4] sm:$0xf]
      %v523 = vld [vmem:[%s2 + $0x8] sm:$0xf]
      %v524 = vld [vmem:[%s2 + $0xc] sm:$0xf]
      %v525 = vld [vmem:[%s2 + $0x10] sm:$0xf]
      %v526 = vld [vmem:[%s2 + $0x14] sm:$0xf]
      %v527 = vld [vmem:[%s2 + $0x18] sm:$0xf]
      %v528 = vld [vmem:[%s2 + $0x1c] sm:$0xf]
      %v529 = vld [vmem:[%s2 + $0x20] sm:$0xf]
      %v530 = vld [vmem:[%s2 + $0x24] sm:$0xf]
      %v531 = vld [vmem:[%s2 + $0x28] sm:$0xf]
      %v532 = vld [vmem:[%s2 + $0x2c] sm:$0xf]
      %v533 = vld [vmem:[%s2 + $0x30] sm:$0xf]
      %v534 = vld [vmem:[%s2 + $0x34] sm:$0xf]
      %v535 = vld [vmem:[%s2 + $0x38] sm:$0xf]
      %v536 = vld [vmem:[%s2 + $0x3c] sm:$0xf]
      %v538 = vshrl.u32 %v516, 16
      %v540 = vrot.slane %v538, 2
      %v541 = vshll.u32 %v516, 16
      %v543 = vrot.slane %v541, 3
      %v544 = vor.u32 %v540, %v543
      %v546 = vshrl.u32 %v517, 16
      %v548 = vrot.slane %v546, 2
      %v549 = vshll.u32 %v517, 16
      %v551 = vrot.slane %v549, 3
      %v552 = vor.u32 %v548, %v551
      %v553 = vsel %vm445, %v544, %v552
      %v555 = vshrl.u32 %v518, 16
      %v557 = vrot.slane %v555, 2
      %v558 = vshll.u32 %v518, 16
      %v560 = vrot.slane %v558, 3
      %v561 = vor.u32 %v557, %v560
      %v562 = vsel %vm445, %v552, %v561
      %v564 = vshrl.u32 %v519, 16
      %v566 = vrot.slane %v564, 2
      %v567 = vshll.u32 %v519, 16
      %v569 = vrot.slane %v567, 3
      %v570 = vor.u32 %v566, %v569
      %v571 = vsel %vm445, %v561, %v570
      %v573 = vshrl.u32 %v520, 16
      %v575 = vrot.slane %v573, 2
      %v576 = vshll.u32 %v520, 16
      %v578 = vrot.slane %v576, 3
      %v579 = vor.u32 %v575, %v578
      %v580 = vsel %vm445, %v570, %v579
      %v602 = vunpack.c.l.b16 %v521
      %v603 = vunpack.c.l.b16 %v522
      %v604 = vunpack.c.l.b16 %v523
      %v605 = vunpack.c.l.b16 %v524
      %v606 = vunpack.c.l.b16 %v525
      %v607 = vunpack.c.l.b16 %v526
      %v608 = vunpack.c.l.b16 %v527
      %v609 = vunpack.c.l.b16 %v528
      %v610 = vunpack.c.l.b16 %v529
      %v611 = vunpack.c.l.b16 %v530
      %v612 = vunpack.c.l.b16 %v531
      %v613 = vunpack.c.l.b16 %v532
      %v614 = vunpack.c.l.b16 %v533
      %v615 = vunpack.c.l.b16 %v534
      %v616 = vunpack.c.l.b16 %v535
      %v617 = vunpack.c.l.b16 %v536
      %v618 = vpack.c.b16 %v603, %v602
      %v619 = vpack.c.b16 %v605, %v604
      %v620 = vpack.c.b16 %v607, %v606
      %v621 = vpack.c.b16 %v609, %v608
      %v622 = vpack.c.b16 %v611, %v610
      %v623 = vpack.c.b16 %v613, %v612
      %v624 = vpack.c.b16 %v615, %v614
      %v625 = vpack.c.b16 %v617, %v616
      %634 = vmatprep.subr.bf16.mxu0 0
      %635 = vmatpush1.bf16.msra.mxu0 %v618
      %636 = vmatprep.subr.bf16.mxu0 0
      %637 = vmatpush1.bf16.msra.mxu0 %v619
      %638 = vmatprep.subr.bf16.mxu0 0
      %639 = vmatpush1.bf16.msra.mxu0 %v620
      %640 = vmatprep.subr.bf16.mxu0 0
      %641 = vmatpush1.bf16.msra.mxu0 %v621
      %642 = vmatprep.subr.bf16.mxu0 0
      %643 = vmatpush1.bf16.msra.mxu0 %v622
      %644 = vmatprep.subr.bf16.mxu0 0
      %645 = vmatpush1.bf16.msra.mxu0 %v623
      %646 = vmatprep.subr.bf16.mxu0 0
      %647 = vmatpush1.bf16.msra.mxu0 %v624
      %648 = vmatprep.subr.bf16.mxu0 0
      %649 = vmatpush1.bf16.msra.mxu0 %v625
      %650 = vmatprep.subr.bf16.mxu0 0
      %651 = vmatpush1.bf16.msra.mxu0 0
      %652 = vmatprep.subr.bf16.mxu0 0
      %653 = vmatpush1.bf16.msra.mxu0 0
      %654 = vmatprep.subr.bf16.mxu0 0
      %655 = vmatpush1.bf16.msra.mxu0 0
      %656 = vmatprep.subr.bf16.mxu0 0
      %657 = vmatpush1.bf16.msra.mxu0 0
      %658 = vmatprep.subr.bf16.mxu0 0
      %659 = vmatpush1.bf16.msra.mxu0 0
      %660 = vmatprep.subr.bf16.mxu0 0
      %661 = vmatpush1.bf16.msra.mxu0 0
      %662 = vmatprep.subr.bf16.mxu0 0
      %663 = vmatpush1.bf16.msra.mxu0 0
      %664 = vmatprep.subr.bf16.mxu0 0
      %665 = vmatpush1.bf16.msra.mxu0 0
      %666 = vmatprep.mubr.bf16.mxu0 0
      %667 = vmatmul.mubr.bf16.gmra.mrb[0].mxu0 %v553
      %v668 = vpop.f32.mrb[0].mxu0
      %v669 = vadd.f32 0.0, %v668
      %v670 = vpop.f32.mrb[0].mxu0
      %v671 = vpop.f32.mrb[0].mxu0
      %v672 = vadd.f32 0.0, %v671
      %v673 = vpop.f32.mrb[0].mxu0
      %674 = vmatprep.mubr.bf16.mxu0 0
      %675 = vmatmul.mubr.bf16.gmra.mrb[0].mxu0 %v562
      %v676 = vpop.f32.mrb[0].mxu0
      %v677 = vadd.f32 0.0, %v676
      %v678 = vpop.f32.mrb[0].mxu0
      %v679 = vpop.f32.mrb[0].mxu0
      %v680 = vadd.f32 0.0, %v679
      %v681 = vpop.f32.mrb[0].mxu0
      %682 = vmatprep.mubr.bf16.mxu0 0
      %683 = vmatmul.mubr.bf16.gmra.mrb[0].mxu0 %v571
      %v684 = vpop.f32.mrb[0].mxu0
      %v685 = vadd.f32 0.0, %v684
      %v686 = vpop.f32.mrb[0].mxu0
      %v687 = vpop.f32.mrb[0].mxu0
      %v688 = vadd.f32 0.0, %v687
      %v689 = vpop.f32.mrb[0].mxu0
      %690 = vmatprep.mubr.bf16.mxu0 0
      %691 = vmatmul.mubr.bf16.gmra.mrb[0].mxu0 %v580
      %v692 = vpop.f32.mrb[0].mxu0
      %v693 = vadd.f32 0.0, %v692
      %v694 = vpop.f32.mrb[0].mxu0
      %v695 = vpop.f32.mrb[0].mxu0
      %v696 = vadd.f32 0.0, %v695
      %v697 = vpop.f32.mrb[0].mxu0
      %698 = vmatprep.mubr.bf16.mxu0 0
      %699 = vmatmul.mubr.bf16.gmra.mrb[0].mxu0 %v579
      %v700 = vpop.f32.mrb[0].mxu0
      %v701 = vadd.f32 0.0, %v700
      %v702 = vpop.f32.mrb[0].mxu0
      %v703 = vpop.f32.mrb[0].mxu0
      %v704 = vpop.f32.mrb[0].mxu0
      %705 = vdwg.mxu0
      %v706 = vadd.f32 %v231, %v669
      %v707 = vadd.f32 %v231, %v672
      %v708 = vadd.f32 %v231, %v677
      %v709 = vadd.f32 %v231, %v680
      %v710 = vadd.f32 %v231, %v685
      %v711 = vadd.f32 %v231, %v688
      %v712 = vadd.f32 %v231, %v693
      %v713 = vadd.f32 %v231, %v696
      %v714 = vadd.f32 %v231, %v701
      %v715 = vld [vmem:[#allocation2] sm:$0xf8]
      %s716 = scalar_lea.vmem %s2, 64
      %v717 = vld [vmem:[%s716] sm:$0xf]
      %v718 = vld [vmem:[%s716 + $0x4] sm:$0xf]
      %v719 = vld [vmem:[%s716 + $0x8] sm:$0xf]
      %v720 = vld [vmem:[%s716 + $0xc] sm:$0xf]
      %v721 = vld [vmem:[%s716 + $0x10] sm:$0xf]
      %v722 = vld [vmem:[%s716 + $0x14] sm:$0xf]
      %v723 = vld [vmem:[%s716 + $0x18] sm:$0xf]
      %v724 = vld [vmem:[%s716 + $0x1c] sm:$0xf]
      %v725 = vld [vmem:[%s716 + $0x20] sm:$0xf]
      %v726 = vld [vmem:[%s716 + $0x24] sm:$0xf]
      %v727 = vld [vmem:[%s716 + $0x28] sm:$0xf]
      %v728 = vld [vmem:[%s716 + $0x2c] sm:$0xf]
      %v729 = vld [vmem:[%s716 + $0x30] sm:$0xf]
      %v730 = vld [vmem:[%s716 + $0x34] sm:$0xf]
      %v731 = vld [vmem:[%s716 + $0x38] sm:$0xf]
      %v732 = vld [vmem:[%s716 + $0x3c] sm:$0xf]
      %vm738 = vcmask 1044480
      %v739 = vrot.slane %v715, 3
      %v740 = vrot.slane %v517, 3
      %v741 = vsel %vm738, %v739, %v740
      %v742 = vrot.slane %v518, 3
      %v743 = vsel %vm738, %v740, %v742
      %v744 = vrot.slane %v519, 3
      %v745 = vsel %vm738, %v742, %v744
      %v746 = vrot.slane %v520, 3
      %v747 = vsel %vm738, %v744, %v746
      %v769 = vunpack.c.l.b16 %v717
      %v770 = vunpack.c.l.b16 %v718
      %v771 = vunpack.c.l.b16 %v719
      %v772 = vunpack.c.l.b16 %v720
      %v773 = vunpack.c.l.b16 %v721
      %v774 = vunpack.c.l.b16 %v722
      %v775 = vunpack.c.l.b16 %v723
      %v776 = vunpack.c.l.b16 %v724
      %v777 = vunpack.c.l.b16 %v725
      %v778 = vunpack.c.l.b16 %v726
      %v779 = vunpack.c.l.b16 %v727
      %v780 = vunpack.c.l.b16 %v728
      %v781 = vunpack.c.l.b16 %v729
      %v782 = vunpack.c.l.b16 %v730
      %v783 = vunpack.c.l.b16 %v731
      %v784 = vunpack.c.l.b16 %v732
      %v785 = vpack.c.b16 %v770, %v769
      %v786 = vpack.c.b16 %v772, %v771
      %v787 = vpack.c.b16 %v774, %v773
      %v788 = vpack.c.b16 %v776, %v775
      %v789 = vpack.c.b16 %v778, %v777
      %v790 = vpack.c.b16 %v780, %v779
      %v791 = vpack.c.b16 %v782, %v781
      %v792 = vpack.c.b16 %v784, %v783
      %801 = vmatprep.subr.bf16.mxu0 0
      %802 = vmatpush1.bf16.msra.mxu0 %v785
      %803 = vmatprep.subr.bf16.mxu0 0
      %804 = vmatpush1.bf16.msra.mxu0 %v786
      %805 = vmatprep.subr.bf16.mxu0 0
      %806 = vmatpush1.bf16.msra.mxu0 %v787
      %807 = vmatprep.subr.bf16.mxu0 0
      %808 = vmatpush1.bf16.msra.mxu0 %v788
      %809 = vmatprep.subr.bf16.mxu0 0
      %810 = vmatpush1.bf16.msra.mxu0 %v789
      %811 = vmatprep.subr.bf16.mxu0 0
      %812 = vmatpush1.bf16.msra.mxu0 %v790
      %813 = vmatprep.subr.bf16.mxu0 0
      %814 = vmatpush1.bf16.msra.mxu0 %v791
      %815 = vmatprep.subr.bf16.mxu0 0
      %816 = vmatpush1.bf16.msra.mxu0 %v792
      %817 = vmatprep.subr.bf16.mxu0 0
      %818 = vmatpush1.bf16.msra.mxu0 0
      %819 = vmatprep.subr.bf16.mxu0 0
      %820 = vmatpush1.bf16.msra.mxu0 0
      %821 = vmatprep.subr.bf16.mxu0 0
      %822 = vmatpush1.bf16.msra.mxu0 0
      %823 = vmatprep.subr.bf16.mxu0 0
      %824 = vmatpush1.bf16.msra.mxu0 0
      %825 = vmatprep.subr.bf16.mxu0 0
      %826 = vmatpush1.bf16.msra.mxu0 0
      %827 = vmatprep.subr.bf16.mxu0 0
      %828 = vmatpush1.bf16.msra.mxu0 0
      %829 = vmatprep.subr.bf16.mxu0 0
      %830 = vmatpush1.bf16.msra.mxu0 0
      %831 = vmatprep.subr.bf16.mxu0 0
      %832 = vmatpush1.bf16.msra.mxu0 0
      %833 = vmatprep.mubr.bf16.mxu0 0
      %834 = vmatmul.mubr.bf16.gmra.mrb[0].mxu0 %v741
      %v835 = vpop.f32.mrb[0].mxu0
      %v836 = vadd.f32 0.0, %v835
      %v837 = vpop.f32.mrb[0].mxu0
      %v838 = vpop.f32.mrb[0].mxu0
      %v839 = vadd.f32 0.0, %v838
      %v840 = vpop.f32.mrb[0].mxu0
      %841 = vmatprep.mubr.bf16.mxu0 0
      %842 = vmatmul.mubr.bf16.gmra.mrb[0].mxu0 %v743
      %v843 = vpop.f32.mrb[0].mxu0
      %v844 = vadd.f32 0.0, %v843
      %v845 = vpop.f32.mrb[0].mxu0
      %v846 = vpop.f32.mrb[0].mxu0
      %v847 = vadd.f32 0.0, %v846
      %v848 = vpop.f32.mrb[0].mxu0
      %849 = vmatprep.mubr.bf16.mxu0 0
      %850 = vmatmul.mubr.bf16.gmra.mrb[0].mxu0 %v745
      %v851 = vpop.f32.mrb[0].mxu0
      %v852 = vadd.f32 0.0, %v851
      %v853 = vpop.f32.mrb[0].mxu0
      %v854 = vpop.f32.mrb[0].mxu0
      %v855 = vadd.f32 0.0, %v854
      %v856 = vpop.f32.mrb[0].mxu0
      %857 = vmatprep.mubr.bf16.mxu0 0
      %858 = vmatmul.mubr.bf16.gmra.mrb[0].mxu0 %v747
      %v859 = vpop.f32.mrb[0].mxu0
      %v860 = vadd.f32 0.0, %v859
      %v861 = vpop.f32.mrb[0].mxu0
      %v862 = vpop.f32.mrb[0].mxu0
      %v863 = vadd.f32 0.0, %v862
      %v864 = vpop.f32.mrb[0].mxu0
      %865 = vmatprep.mubr.bf16.mxu0 0
      %866 = vmatmul.mubr.bf16.gmra.mrb[0].mxu0 %v746
      %v867 = vpop.f32.mrb[0].mxu0
      %v868 = vadd.f32 0.0, %v867
      %v869 = vpop.f32.mrb[0].mxu0
      %v870 = vpop.f32.mrb[0].mxu0
      %v871 = vpop.f32.mrb[0].mxu0
      %872 = vdwg.mxu0
      %v873 = vadd.f32 %v706, %v836
      %v874 = vadd.f32 %v707, %v839
      %v875 = vadd.f32 %v708, %v844
      %v876 = vadd.f32 %v709, %v847
      %v877 = vadd.f32 %v710, %v852
      %v878 = vadd.f32 %v711, %v855
      %v879 = vadd.f32 %v712, %v860
      %v880 = vadd.f32 %v713, %v863
      %v881 = vadd.f32 %v714, %v868
      %v882 = vld [vmem:[#allocation2 + $0x20] sm:$0xff]
      %s883 = scalar_lea.vmem %s2, 128
      %v884 = vld [vmem:[%s883] sm:$0xf]
      %v885 = vld [vmem:[%s883 + $0x4] sm:$0xf]
      %v886 = vld [vmem:[%s883 + $0x8] sm:$0xf]
      %v887 = vld [vmem:[%s883 + $0xc] sm:$0xf]
      %v888 = vld [vmem:[%s883 + $0x10] sm:$0xf]
      %v889 = vld [vmem:[%s883 + $0x14] sm:$0xf]
      %v890 = vld [vmem:[%s883 + $0x18] sm:$0xf]
      %v891 = vld [vmem:[%s883 + $0x1c] sm:$0xf]
      %v892 = vld [vmem:[%s883 + $0x20] sm:$0xf]
      %v893 = vld [vmem:[%s883 + $0x24] sm:$0xf]
      %v894 = vld [vmem:[%s883 + $0x28] sm:$0xf]
      %v895 = vld [vmem:[%s883 + $0x2c] sm:$0xf]
      %v896 = vld [vmem:[%s883 + $0x30] sm:$0xf]
      %v897 = vld [vmem:[%s883 + $0x34] sm:$0xf]
      %v898 = vld [vmem:[%s883 + $0x38] sm:$0xf]
      %v899 = vld [vmem:[%s883 + $0x3c] sm:$0xf]
      %vm900 = vsmask.f32 4352
      %v902 = vshrl.u32 %v715, 16
      %v904 = vrot.slane %v902, 3
      %v905 = vshll.u32 %v715, 16
      %v907 = vrot.slane %v905, 4
      %v908 = vor.u32 %v904, %v907
      %v909 = vrot.slane %v546, 3
      %v910 = vrot.slane %v549, 4
      %v911 = vor.u32 %v909, %v910
      %v912 = vsel %vm900, %v908, %v911
      %v913 = vrot.slane %v555, 3
      %v914 = vrot.slane %v558, 4
      %v915 = vor.u32 %v913, %v914
      %v916 = vsel %vm900, %v911, %v915
      %v917 = vrot.slane %v564, 3
      %v918 = vrot.slane %v567, 4
      %v919 = vor.u32 %v917, %v918
      %v920 = vsel %vm900, %v915, %v919
      %v922 = vshrl.u32 %v882, 16
      %v924 = vrot.slane %v922, 3
      %v925 = vshll.u32 %v882, 16
      %v927 = vrot.slane %v925, 4
      %v928 = vor.u32 %v924, %v927
      %v929 = vsel %vm900, %v919, %v928
      %v951 = vunpack.c.l.b16 %v884
      %v952 = vunpack.c.l.b16 %v885
      %v953 = vunpack.c.l.b16 %v886
      %v954 = vunpack.c.l.b16 %v887
      %v955 = vunpack.c.l.b16 %v888
      %v956 = vunpack.c.l.b16 %v889
      %v957 = vunpack.c.l.b16 %v890
      %v958 = vunpack.c.l.b16 %v891
      %v959 = vunpack.c.l.b16 %v892
      %v960 = vunpack.c.l.b16 %v893
      %v961 = vunpack.c.l.b16 %v894
      %v962 = vunpack.c.l.b16 %v895
      %v963 = vunpack.c.l.b16 %v896
      %v964 = vunpack.c.l.b16 %v897
      %v965 = vunpack.c.l.b16 %v898
      %v966 = vunpack.c.l.b16 %v899
      %v967 = vpack.c.b16 %v952, %v951
      %v968 = vpack.c.b16 %v954, %v953
      %v969 = vpack.c.b16 %v956, %v955
      %v970 = vpack.c.b16 %v958, %v957
      %v971 = vpack.c.b16 %v960, %v959
      %v972 = vpack.c.b16 %v962, %v961
      %v973 = vpack.c.b16 %v964, %v963
      %v974 = vpack.c.b16 %v966, %v965
      %983 = vmatprep.subr.bf16.mxu0 0
      %984 = vmatpush1.bf16.msra.mxu0 %v967
      %985 = vmatprep.subr.bf16.mxu0 0
      %986 = vmatpush1.bf16.msra.mxu0 %v968
      %987 = vmatprep.subr.bf16.mxu0 0
      %988 = vmatpush1.bf16.msra.mxu0 %v969
      %989 = vmatprep.subr.bf16.mxu0 0
      %990 = vmatpush1.bf16.msra.mxu0 %v970
      %991 = vmatprep.subr.bf16.mxu0 0
      %992 = vmatpush1.bf16.msra.mxu0 %v971
      %993 = vmatprep.subr.bf16.mxu0 0
      %994 = vmatpush1.bf16.msra.mxu0 %v972
      %995 = vmatprep.subr.bf16.mxu0 0
      %996 = vmatpush1.bf16.msra.mxu0 %v973
      %997 = vmatprep.subr.bf16.mxu0 0
      %998 = vmatpush1.bf16.msra.mxu0 %v974
      %999 = vmatprep.subr.bf16.mxu0 0
      %1000 = vmatpush1.bf16.msra.mxu0 0
      %1001 = vmatprep.subr.bf16.mxu0 0
      %1002 = vmatpush1.bf16.msra.mxu0 0
      %1003 = vmatprep.subr.bf16.mxu0 0
      %1004 = vmatpush1.bf16.msra.mxu0 0
      %1005 = vmatprep.subr.bf16.mxu0 0
      %1006 = vmatpush1.bf16.msra.mxu0 0
      %1007 = vmatprep.subr.bf16.mxu0 0
      %1008 = vmatpush1.bf16.msra.mxu0 0
      %1009 = vmatprep.subr.bf16.mxu0 0
      %1010 = vmatpush1.bf16.msra.mxu0 0
      %1011 = vmatprep.subr.bf16.mxu0 0
      %1012 = vmatpush1.bf16.msra.mxu0 0
      %1013 = vmatprep.subr.bf16.mxu0 0
      %1014 = vmatpush1.bf16.msra.mxu0 0
      %1015 = vmatprep.mubr.bf16.mxu0 0
      %1016 = vmatmul.mubr.bf16.gmra.mrb[0].mxu0 %v912
      %v1017 = vpop.f32.mrb[0].mxu0
      %v1018 = vadd.f32 0.0, %v1017
      %v1019 = vpop.f32.mrb[0].mxu0
      %v1020 = vpop.f32.mrb[0].mxu0
      %v1021 = vadd.f32 0.0, %v1020
      %v1022 = vpop.f32.mrb[0].mxu0
      %1023 = vmatprep.mubr.bf16.mxu0 0
      %1024 = vmatmul.mubr.bf16.gmra.mrb[0].mxu0 %v916
      %v1025 = vpop.f32.mrb[0].mxu0
      %v1026 = vadd.f32 0.0, %v1025
      %v1027 = vpop.f32.mrb[0].mxu0
      %v1028 = vpop.f32.mrb[0].mxu0
      %v1029 = vadd.f32 0.0, %v1028
      %v1030 = vpop.f32.mrb[0].mxu0
      %1031 = vmatprep.mubr.bf16.mxu0 0
      %1032 = vmatmul.mubr.bf16.gmra.mrb[0].mxu0 %v920
      %v1033 = vpop.f32.mrb[0].mxu0
      %v1034 = vadd.f32 0.0, %v1033
      %v1035 = vpop.f32.mrb[0].mxu0
      %v1036 = vpop.f32.mrb[0].mxu0
      %v1037 = vadd.f32 0.0, %v1036
      %v1038 = vpop.f32.mrb[0].mxu0
      %1039 = vmatprep.mubr.bf16.mxu0 0
      %1040 = vmatmul.mubr.bf16.gmra.mrb[0].mxu0 %v929
      %v1041 = vpop.f32.mrb[0].mxu0
      %v1042 = vadd.f32 0.0, %v1041
      %v1043 = vpop.f32.mrb[0].mxu0
      %v1044 = vpop.f32.mrb[0].mxu0
      %v1045 = vadd.f32 0.0, %v1044
      %v1046 = vpop.f32.mrb[0].mxu0
      %1047 = vmatprep.mubr.bf16.mxu0 0
      %1048 = vmatmul.mubr.bf16.gmra.mrb[0].mxu0 %v928
      %v1049 = vpop.f32.mrb[0].mxu0
      %v1050 = vadd.f32 0.0, %v1049
      %v1051 = vpop.f32.mrb[0].mxu0
      %v1052 = vpop.f32.mrb[0].mxu0
      %v1053 = vpop.f32.mrb[0].mxu0
      %1054 = vdwg.mxu0
      %v1055 = vadd.f32 %v873, %v1018
      %v1056 = vadd.f32 %v874, %v1021
      %v1057 = vadd.f32 %v875, %v1026
      %v1058 = vadd.f32 %v876, %v1029
      %v1059 = vadd.f32 %v877, %v1034
      %v1060 = vadd.f32 %v878, %v1037
      %v1061 = vadd.f32 %v879, %v1042
      %v1062 = vadd.f32 %v880, %v1045
      %v1063 = vadd.f32 %v881, %v1050
      %v1064 = vld [vmem:[#allocation2 + $0x8] sm:$0xf8]
      %v1065 = vld [vmem:[#allocation2 + $0x10] sm:$0xff]
      %v1066 = vld [vmem:[#allocation2 + $0x18] sm:$0xff]
      %v1067 = vld [vmem:[#allocation2 + $0x20] sm:$0xff]
      %v1068 = vld [vmem:[#allocation2 + $0x28] sm:$0xff]
      %s1069 = scalar_lea.vmem %s2, 192
      %v1070 = vld [vmem:[%s1069] sm:$0xf]
      %v1071 = vld [vmem:[%s1069 + $0x4] sm:$0xf]
      %v1072 = vld [vmem:[%s1069 + $0x8] sm:$0xf]
      %v1073 = vld [vmem:[%s1069 + $0xc] sm:$0xf]
      %v1074 = vld [vmem:[%s1069 + $0x10] sm:$0xf]
      %v1075 = vld [vmem:[%s1069 + $0x14] sm:$0xf]
      %v1076 = vld [vmem:[%s1069 + $0x18] sm:$0xf]
      %v1077 = vld [vmem:[%s1069 + $0x1c] sm:$0xf]
      %v1078 = vld [vmem:[%s1069 + $0x20] sm:$0xf]
      %v1079 = vld [vmem:[%s1069 + $0x24] sm:$0xf]
      %v1080 = vld [vmem:[%s1069 + $0x28] sm:$0xf]
      %v1081 = vld [vmem:[%s1069 + $0x2c] sm:$0xf]
      %v1082 = vld [vmem:[%s1069 + $0x30] sm:$0xf]
      %v1083 = vld [vmem:[%s1069 + $0x34] sm:$0xf]
      %v1084 = vld [vmem:[%s1069 + $0x38] sm:$0xf]
      %v1085 = vld [vmem:[%s1069 + $0x3c] sm:$0xf]
      %v1087 = vshrl.u32 %v1064, 16
      %v1089 = vrot.slane %v1087, 3
      %v1090 = vshll.u32 %v1064, 16
      %v1092 = vrot.slane %v1090, 4
      %v1093 = vor.u32 %v1089, %v1092
      %v1095 = vshrl.u32 %v1065, 16
      %v1097 = vrot.slane %v1095, 3
      %v1098 = vshll.u32 %v1065, 16
      %v1100 = vrot.slane %v1098, 4
      %v1101 = vor.u32 %v1097, %v1100
      %v1102 = vsel %vm900, %v1093, %v1101
      %v1104 = vshrl.u32 %v1066, 16
      %v1106 = vrot.slane %v1104, 3
      %v1107 = vshll.u32 %v1066, 16
      %v1109 = vrot.slane %v1107, 4
      %v1110 = vor.u32 %v1106, %v1109
      %v1111 = vsel %vm900, %v1101, %v1110
      %v1113 = vshrl.u32 %v1067, 16
      %v1115 = vrot.slane %v1113, 3
      %v1116 = vshll.u32 %v1067, 16
      %v1118 = vrot.slane %v1116, 4
      %v1119 = vor.u32 %v1115, %v1118
      %v1120 = vsel %vm900, %v1110, %v1119
      %v1122 = vshrl.u32 %v1068, 16
      %v1124 = vrot.slane %v1122, 3
      %v1125 = vshll.u32 %v1068, 16
      %v1127 = vrot.slane %v1125, 4
      %v1128 = vor.u32 %v1124, %v1127
      %v1129 = vsel %vm900, %v1119, %v1128
      %v1151 = vunpack.c.l.b16 %v1070
      %v1152 = vunpack.c.l.b16 %v1071
      %v1153 = vunpack.c.l.b16 %v1072
      %v1154 = vunpack.c.l.b16 %v1073
      %v1155 = vunpack.c.l.b16 %v1074
      %v1156 = vunpack.c.l.b16 %v1075
      %v1157 = vunpack.c.l.b16 %v1076
      %v1158 = vunpack.c.l.b16 %v1077
      %v1159 = vunpack.c.l.b16 %v1078
      %v1160 = vunpack.c.l.b16 %v1079
      %v1161 = vunpack.c.l.b16 %v1080
      %v1162 = vunpack.c.l.b16 %v1081
      %v1163 = vunpack.c.l.b16 %v1082
      %v1164 = vunpack.c.l.b16 %v1083
      %v1165 = vunpack.c.l.b16 %v1084
      %v1166 = vunpack.c.l.b16 %v1085
      %v1167 = vpack.c.b16 %v1152, %v1151
      %v1168 = vpack.c.b16 %v1154, %v1153
      %v1169 = vpack.c.b16 %v1156, %v1155
      %v1170 = vpack.c.b16 %v1158, %v1157
      %v1171 = vpack.c.b16 %v1160, %v1159
      %v1172 = vpack.c.b16 %v1162, %v1161
      %v1173 = vpack.c.b16 %v1164, %v1163
      %v1174 = vpack.c.b16 %v1166, %v1165
      %1183 = vmatprep.subr.bf16.mxu0 0
      %1184 = vmatpush1.bf16.msra.mxu0 %v1167
      %1185 = vmatprep.subr.bf16.mxu0 0
      %1186 = vmatpush1.bf16.msra.mxu0 %v1168
      %1187 = vmatprep.subr.bf16.mxu0 0
      %1188 = vmatpush1.bf16.msra.mxu0 %v1169
      %1189 = vmatprep.subr.bf16.mxu0 0
      %1190 = vmatpush1.bf16.msra.mxu0 %v1170
      %1191 = vmatprep.subr.bf16.mxu0 0
      %1192 = vmatpush1.bf16.msra.mxu0 %v1171
      %1193 = vmatprep.subr.bf16.mxu0 0
      %1194 = vmatpush1.bf16.msra.mxu0 %v1172
      %1195 = vmatprep.subr.bf16.mxu0 0
      %1196 = vmatpush1.bf16.msra.mxu0 %v1173
      %1197 = vmatprep.subr.bf16.mxu0 0
      %1198 = vmatpush1.bf16.msra.mxu0 %v1174
      %1199 = vmatprep.subr.bf16.mxu0 0
      %1200 = vmatpush1.bf16.msra.mxu0 0
      %1201 = vmatprep.subr.bf16.mxu0 0
      %1202 = vmatpush1.bf16.msra.mxu0 0
      %1203 = vmatprep.subr.bf16.mxu0 0
      %1204 = vmatpush1.bf16.msra.mxu0 0
      %1205 = vmatprep.subr.bf16.mxu0 0
      %1206 = vmatpush1.bf16.msra.mxu0 0
      %1207 = vmatprep.subr.bf16.mxu0 0
      %1208 = vmatpush1.bf16.msra.mxu0 0
      %1209 = vmatprep.subr.bf16.mxu0 0
      %1210 = vmatpush1.bf16.msra.mxu0 0
      %1211 = vmatprep.subr.bf16.mxu0 0
      %1212 = vmatpush1.bf16.msra.mxu0 0
      %1213 = vmatprep.subr.bf16.mxu0 0
      %1214 = vmatpush1.bf16.msra.mxu0 0
      %1215 = vmatprep.mubr.bf16.mxu0 0
      %1216 = vmatmul.mubr.bf16.gmra.mrb[0].mxu0 %v1102
      %v1217 = vpop.f32.mrb[0].mxu0
      %v1218 = vadd.f32 0.0, %v1217
      %v1219 = vpop.f32.mrb[0].mxu0
      %v1220 = vpop.f32.mrb[0].mxu0
      %v1221 = vadd.f32 0.0, %v1220
      %v1222 = vpop.f32.mrb[0].mxu0
      %1223 = vmatprep.mubr.bf16.mxu0 0
      %1224 = vmatmul.mubr.bf16.gmra.mrb[0].mxu0 %v1111
      %v1225 = vpop.f32.mrb[0].mxu0
      %v1226 = vadd.f32 0.0, %v1225
      %v1227 = vpop.f32.mrb[0].mxu0
      %v1228 = vpop.f32.mrb[0].mxu0
      %v1229 = vadd.f32 0.0, %v1228
      %v1230 = vpop.f32.mrb[0].mxu0
      %1231 = vmatprep.mubr.bf16.mxu0 0
      %1232 = vmatmul.mubr.bf16.gmra.mrb[0].mxu0 %v1120
      %v1233 = vpop.f32.mrb[0].mxu0
      %v1234 = vadd.f32 0.0, %v1233
      %v1235 = vpop.f32.mrb[0].mxu0
      %v1236 = vpop.f32.mrb[0].mxu0
      %v1237 = vadd.f32 0.0, %v1236
      %v1238 = vpop.f32.mrb[0].mxu0
      %1239 = vmatprep.mubr.bf16.mxu0 0
      %1240 = vmatmul.mubr.bf16.gmra.mrb[0].mxu0 %v1129
      %v1241 = vpop.f32.mrb[0].mxu0
      %v1242 = vadd.f32 0.0, %v1241
      %v1243 = vpop.f32.mrb[0].mxu0
      %v1244 = vpop.f32.mrb[0].mxu0
      %v1245 = vadd.f32 0.0, %v1244
      %v1246 = vpop.f32.mrb[0].mxu0
      %1247 = vmatprep.mubr.bf16.mxu0 0
      %1248 = vmatmul.mubr.bf16.gmra.mrb[0].mxu0 %v1128
      %v1249 = vpop.f32.mrb[0].mxu0
      %v1250 = vadd.f32 0.0, %v1249
      %v1251 = vpop.f32.mrb[0].mxu0
      %v1252 = vpop.f32.mrb[0].mxu0
      %v1253 = vpop.f32.mrb[0].mxu0
      %1254 = vdwg.mxu0
      %v1255 = vadd.f32 %v1055, %v1218
      %v1256 = vadd.f32 %v1056, %v1221
      %v1257 = vadd.f32 %v1057, %v1226
      %v1258 = vadd.f32 %v1058, %v1229
      %v1259 = vadd.f32 %v1059, %v1234
      %v1260 = vadd.f32 %v1060, %v1237
      %v1261 = vadd.f32 %v1061, %v1242
      %v1262 = vadd.f32 %v1062, %v1245
      %v1263 = vadd.f32 %v1063, %v1250
      %v1264 = vld [vmem:[#allocation2 + $0x8] sm:$0xf0]
      %s1265 = scalar_lea.vmem %s2, 256
      %v1266 = vld [vmem:[%s1265] sm:$0xf]
      %v1267 = vld [vmem:[%s1265 + $0x4] sm:$0xf]
      %v1268 = vld [vmem:[%s1265 + $0x8] sm:$0xf]
      %v1269 = vld [vmem:[%s1265 + $0xc] sm:$0xf]
      %v1270 = vld [vmem:[%s1265 + $0x10] sm:$0xf]
      %v1271 = vld [vmem:[%s1265 + $0x14] sm:$0xf]
      %v1272 = vld [vmem:[%s1265 + $0x18] sm:$0xf]
      %v1273 = vld [vmem:[%s1265 + $0x1c] sm:$0xf]
      %v1274 = vld [vmem:[%s1265 + $0x20] sm:$0xf]
      %v1275 = vld [vmem:[%s1265 + $0x24] sm:$0xf]
      %v1276 = vld [vmem:[%s1265 + $0x28] sm:$0xf]
      %v1277 = vld [vmem:[%s1265 + $0x2c] sm:$0xf]
      %v1278 = vld [vmem:[%s1265 + $0x30] sm:$0xf]
      %v1279 = vld [vmem:[%s1265 + $0x34] sm:$0xf]
      %v1280 = vld [vmem:[%s1265 + $0x38] sm:$0xf]
      %v1281 = vld [vmem:[%s1265 + $0x3c] sm:$0xf]
      %v1287 = vrot.slane %v1264, 4
      %v1288 = vrot.slane %v1065, 4
      %v1289 = vsel %vm425, %v1287, %v1288
      %v1290 = vrot.slane %v1066, 4
      %v1291 = vsel %vm425, %v1288, %v1290
      %v1292 = vrot.slane %v1067, 4
      %v1293 = vsel %vm425, %v1290, %v1292
      %v1294 = vrot.slane %v1068, 4
      %v1295 = vsel %vm425, %v1292, %v1294
      %v1317 = vunpack.c.l.b16 %v1266
      %v1318 = vunpack.c.l.b16 %v1267
      %v1319 = vunpack.c.l.b16 %v1268
      %v1320 = vunpack.c.l.b16 %v1269
      %v1321 = vunpack.c.l.b16 %v1270
      %v1322 = vunpack.c.l.b16 %v1271
      %v1323 = vunpack.c.l.b16 %v1272
      %v1324 = vunpack.c.l.b16 %v1273
      %v1325 = vunpack.c.l.b16 %v1274
      %v1326 = vunpack.c.l.b16 %v1275
      %v1327 = vunpack.c.l.b16 %v1276
      %v1328 = vunpack.c.l.b16 %v1277
      %v1329 = vunpack.c.l.b16 %v1278
      %v1330 = vunpack.c.l.b16 %v1279
      %v1331 = vunpack.c.l.b16 %v1280
      %v1332 = vunpack.c.l.b16 %v1281
      %v1333 = vpack.c.b16 %v1318, %v1317
      %v1334 = vpack.c.b16 %v1320, %v1319
      %v1335 = vpack.c.b16 %v1322, %v1321
      %v1336 = vpack.c.b16 %v1324, %v1323
      %v1337 = vpack.c.b16 %v1326, %v1325
      %v1338 = vpack.c.b16 %v1328, %v1327
      %v1339 = vpack.c.b16 %v1330, %v1329
      %v1340 = vpack.c.b16 %v1332, %v1331
      %1349 = vmatprep.subr.bf16.mxu0 0
      %1350 = vmatpush1.bf16.msra.mxu0 %v1333
      %1351 = vmatprep.subr.bf16.mxu0 0
      %1352 = vmatpush1.bf16.msra.mxu0 %v1334
      %1353 = vmatprep.subr.bf16.mxu0 0
      %1354 = vmatpush1.bf16.msra.mxu0 %v1335
      %1355 = vmatprep.subr.bf16.mxu0 0
      %1356 = vmatpush1.bf16.msra.mxu0 %v1336
      %1357 = vmatprep.subr.bf16.mxu0 0
      %1358 = vmatpush1.bf16.msra.mxu0 %v1337
      %1359 = vmatprep.subr.bf16.mxu0 0
      %1360 = vmatpush1.bf16.msra.mxu0 %v1338
      %1361 = vmatprep.subr.bf16.mxu0 0
      %1362 = vmatpush1.bf16.msra.mxu0 %v1339
      %1363 = vmatprep.subr.bf16.mxu0 0
      %1364 = vmatpush1.bf16.msra.mxu0 %v1340
      %1365 = vmatprep.subr.bf16.mxu0 0
      %1366 = vmatpush1.bf16.msra.mxu0 0
      %1367 = vmatprep.subr.bf16.mxu0 0
      %1368 = vmatpush1.bf16.msra.mxu0 0
      %1369 = vmatprep.subr.bf16.mxu0 0
      %1370 = vmatpush1.bf16.msra.mxu0 0
      %1371 = vmatprep.subr.bf16.mxu0 0
      %1372 = vmatpush1.bf16.msra.mxu0 0
      %1373 = vmatprep.subr.bf16.mxu0 0
      %1374 = vmatpush1.bf16.msra.mxu0 0
      %1375 = vmatprep.subr.bf16.mxu0 0
      %1376 = vmatpush1.bf16.msra.mxu0 0
      %1377 = vmatprep.subr.bf16.mxu0 0
      %1378 = vmatpush1.bf16.msra.mxu0 0
      %1379 = vmatprep.subr.bf16.mxu0 0
      %1380 = vmatpush1.bf16.msra.mxu0 0
      %1381 = vmatprep.mubr.bf16.mxu0 0
      %1382 = vmatmul.mubr.bf16.gmra.mrb[0].mxu0 %v1289
      %v1383 = vpop.f32.mrb[0].mxu0
      %v1384 = vadd.f32 0.0, %v1383
      %v1385 = vpop.f32.mrb[0].mxu0
      %v1386 = vpop.f32.mrb[0].mxu0
      %v1387 = vadd.f32 0.0, %v1386
      %v1388 = vpop.f32.mrb[0].mxu0
      %1389 = vmatprep.mubr.bf16.mxu0 0
      %1390 = vmatmul.mubr.bf16.gmra.mrb[0].mxu0 %v1291
      %v1391 = vpop.f32.mrb[0].mxu0
      %v1392 = vadd.f32 0.0, %v1391
      %v1393 = vpop.f32.mrb[0].mxu0
      %v1394 = vpop.f32.mrb[0].mxu0
      %v1395 = vadd.f32 0.0, %v1394
      %v1396 = vpop.f32.mrb[0].mxu0
      %1397 = vmatprep.mubr.bf16.mxu0 0
      %1398 = vmatmul.mubr.bf16.gmra.mrb[0].mxu0 %v1293
      %v1399 = vpop.f32.mrb[0].mxu0
      %v1400 = vadd.f32 0.0, %v1399
      %v1401 = vpop.f32.mrb[0].mxu0
      %v1402 = vpop.f32.mrb[0].mxu0
      %v1403 = vadd.f32 0.0, %v1402
      %v1404 = vpop.f32.mrb[0].mxu0
      %1405 = vmatprep.mubr.bf16.mxu0 0
      %1406 = vmatmul.mubr.bf16.gmra.mrb[0].mxu0 %v1295
      %v1407 = vpop.f32.mrb[0].mxu0
      %v1408 = vadd.f32 0.0, %v1407
      %v1409 = vpop.f32.mrb[0].mxu0
      %v1410 = vpop.f32.mrb[0].mxu0
      %v1411 = vadd.f32 0.0, %v1410
      %v1412 = vpop.f32.mrb[0].mxu0
      %1413 = vmatprep.mubr.bf16.mxu0 0
      %1414 = vmatmul.mubr.bf16.gmra.mrb[0].mxu0 %v1294
      %v1415 = vpop.f32.mrb[0].mxu0
      %v1416 = vadd.f32 0.0, %v1415
      %v1417 = vpop.f32.mrb[0].mxu0
      %v1418 = vpop.f32.mrb[0].mxu0
      %v1419 = vpop.f32.mrb[0].mxu0
      %1420 = vdwg.mxu0
      %v1421 = vadd.f32 %v1255, %v1384
      %v1422 = vadd.f32 %v1256, %v1387
      %v1423 = vadd.f32 %v1257, %v1392
      %v1424 = vadd.f32 %v1258, %v1395
      %v1425 = vadd.f32 %v1259, %v1400
      %v1426 = vadd.f32 %v1260, %v1403
      %v1427 = vadd.f32 %v1261, %v1408
      %v1428 = vadd.f32 %v1262, %v1411
      %v1429 = vadd.f32 %v1263, %v1416
      %v1430 = vld [vmem:[#allocation2 + $0x8] sm:$0xf0]
      %v1431 = vld [vmem:[#allocation2 + $0x10] sm:$0xff]
      %v1432 = vld [vmem:[#allocation2 + $0x18] sm:$0xff]
      %v1433 = vld [vmem:[#allocation2 + $0x20] sm:$0xff]
      %v1434 = vld [vmem:[#allocation2 + $0x28] sm:$0xff]
      %v1435 = vld [vmem:[#allocation2 + $0x30] sm:$0x1]
      %s1436 = scalar_lea.vmem %s2, 320
      %v1437 = vld [vmem:[%s1436] sm:$0xf]
      %v1438 = vld [vmem:[%s1436 + $0x4] sm:$0xf]
      %v1439 = vld [vmem:[%s1436 + $0x8] sm:$0xf]
      %v1440 = vld [vmem:[%s1436 + $0xc] sm:$0xf]
      %v1441 = vld [vmem:[%s1436 + $0x10] sm:$0xf]
      %v1442 = vld [vmem:[%s1436 + $0x14] sm:$0xf]
      %v1443 = vld [vmem:[%s1436 + $0x18] sm:$0xf]
      %v1444 = vld [vmem:[%s1436 + $0x1c] sm:$0xf]
      %v1445 = vld [vmem:[%s1436 + $0x20] sm:$0xf]
      %v1446 = vld [vmem:[%s1436 + $0x24] sm:$0xf]
      %v1447 = vld [vmem:[%s1436 + $0x28] sm:$0xf]
      %v1448 = vld [vmem:[%s1436 + $0x2c] sm:$0xf]
      %v1449 = vld [vmem:[%s1436 + $0x30] sm:$0xf]
      %v1450 = vld [vmem:[%s1436 + $0x34] sm:$0xf]
      %v1451 = vld [vmem:[%s1436 + $0x38] sm:$0xf]
      %v1452 = vld [vmem:[%s1436 + $0x3c] sm:$0xf]
      %vm1453 = vsmask.f32 3328
      %v1455 = vshrl.u32 %v1430, 16
      %v1457 = vrot.slane %v1455, 4
      %v1458 = vshll.u32 %v1430, 16
      %v1460 = vrot.slane %v1458, 5
      %v1461 = vor.u32 %v1457, %v1460
      %v1463 = vshrl.u32 %v1431, 16
      %v1465 = vrot.slane %v1463, 4
      %v1466 = vshll.u32 %v1431, 16
      %v1468 = vrot.slane %v1466, 5
      %v1469 = vor.u32 %v1465, %v1468
      %v1470 = vsel %vm1453, %v1461, %v1469
      %v1472 = vshrl.u32 %v1432, 16
      %v1474 = vrot.slane %v1472, 4
      %v1475 = vshll.u32 %v1432, 16
      %v1477 = vrot.slane %v1475, 5
      %v1478 = vor.u32 %v1474, %v1477
      %v1479 = vsel %vm1453, %v1469, %v1478
      %v1481 = vshrl.u32 %v1433, 16
      %v1483 = vrot.slane %v1481, 4
      %v1484 = vshll.u32 %v1433, 16
      %v1486 = vrot.slane %v1484, 5
      %v1487 = vor.u32 %v1483, %v1486
      %v1488 = vsel %vm1453, %v1478, %v1487
      %v1490 = vshrl.u32 %v1434, 16
      %v1492 = vrot.slane %v1490, 4
      %v1493 = vshll.u32 %v1434, 16
      %v1495 = vrot.slane %v1493, 5
      %v1496 = vor.u32 %v1492, %v1495
      %v1497 = vsel %vm1453, %v1487, %v1496
      %v1499 = vshll.u32 %v1435, 16
      %v1501 = vrot.slane %v1499, 5
      %v1502 = vsel %vm1453, %v1496, %v1501
      %v1524 = vunpack.c.l.b16 %v1437
      %v1525 = vunpack.c.l.b16 %v1438
      %v1526 = vunpack.c.l.b16 %v1439
      %v1527 = vunpack.c.l.b16 %v1440
      %v1528 = vunpack.c.l.b16 %v1441
      %v1529 = vunpack.c.l.b16 %v1442
      %v1530 = vunpack.c.l.b16 %v1443
      %v1531 = vunpack.c.l.b16 %v1444
      %v1532 = vunpack.c.l.b16 %v1445
      %v1533 = vunpack.c.l.b16 %v1446
      %v1534 = vunpack.c.l.b16 %v1447
      %v1535 = vunpack.c.l.b16 %v1448
      %v1536 = vunpack.c.l.b16 %v1449
      %v1537 = vunpack.c.l.b16 %v1450
      %v1538 = vunpack.c.l.b16 %v1451
      %v1539 = vunpack.c.l.b16 %v1452
      %v1540 = vpack.c.b16 %v1525, %v1524
      %v1541 = vpack.c.b16 %v1527, %v1526
      %v1542 = vpack.c.b16 %v1529, %v1528
      %v1543 = vpack.c.b16 %v1531, %v1530
      %v1544 = vpack.c.b16 %v1533, %v1532
      %v1545 = vpack.c.b16 %v1535, %v1534
      %v1546 = vpack.c.b16 %v1537, %v1536
      %v1547 = vpack.c.b16 %v1539, %v1538
      %1556 = vmatprep.subr.bf16.mxu0 0
      %1557 = vmatpush1.bf16.msra.mxu0 %v1540
      %1558 = vmatprep.subr.bf16.mxu0 0
      %1559 = vmatpush1.bf16.msra.mxu0 %v1541
      %1560 = vmatprep.subr.bf16.mxu0 0
      %1561 = vmatpush1.bf16.msra.mxu0 %v1542
      %1562 = vmatprep.subr.bf16.mxu0 0
      %1563 = vmatpush1.bf16.msra.mxu0 %v1543
      %1564 = vmatprep.subr.bf16.mxu0 0
      %1565 = vmatpush1.bf16.msra.mxu0 %v1544
      %1566 = vmatprep.subr.bf16.mxu0 0
      %1567 = vmatpush1.bf16.msra.mxu0 %v1545
      %1568 = vmatprep.subr.bf16.mxu0 0
      %1569 = vmatpush1.bf16.msra.mxu0 %v1546
      %1570 = vmatprep.subr.bf16.mxu0 0
      %1571 = vmatpush1.bf16.msra.mxu0 %v1547
      %1572 = vmatprep.subr.bf16.mxu0 0
      %1573 = vmatpush1.bf16.msra.mxu0 0
      %1574 = vmatprep.subr.bf16.mxu0 0
      %1575 = vmatpush1.bf16.msra.mxu0 0
      %1576 = vmatprep.subr.bf16.mxu0 0
      %1577 = vmatpush1.bf16.msra.mxu0 0
      %1578 = vmatprep.subr.bf16.mxu0 0
      %1579 = vmatpush1.bf16.msra.mxu0 0
      %1580 = vmatprep.subr.bf16.mxu0 0
      %1581 = vmatpush1.bf16.msra.mxu0 0
      %1582 = vmatprep.subr.bf16.mxu0 0
      %1583 = vmatpush1.bf16.msra.mxu0 0
      %1584 = vmatprep.subr.bf16.mxu0 0
      %1585 = vmatpush1.bf16.msra.mxu0 0
      %1586 = vmatprep.subr.bf16.mxu0 0
      %1587 = vmatpush1.bf16.msra.mxu0 0
      %1588 = vmatprep.mubr.bf16.mxu0 0
      %1589 = vmatmul.mubr.bf16.gmra.mrb[0].mxu0 %v1470
      %v1590 = vpop.f32.mrb[0].mxu0
      %v1591 = vadd.f32 0.0, %v1590
      %v1592 = vpop.f32.mrb[0].mxu0
      %v1593 = vpop.f32.mrb[0].mxu0
      %v1594 = vadd.f32 0.0, %v1593
      %v1595 = vpop.f32.mrb[0].mxu0
      %1596 = vmatprep.mubr.bf16.mxu0 0
      %1597 = vmatmul.mubr.bf16.gmra.mrb[0].mxu0 %v1479
      %v1598 = vpop.f32.mrb[0].mxu0
      %v1599 = vadd.f32 0.0, %v1598
      %v1600 = vpop.f32.mrb[0].mxu0
      %v1601 = vpop.f32.mrb[0].mxu0
      %v1602 = vadd.f32 0.0, %v1601
      %v1603 = vpop.f32.mrb[0].mxu0
      %1604 = vmatprep.mubr.bf16.mxu0 0
      %1605 = vmatmul.mubr.bf16.gmra.mrb[0].mxu0 %v1488
      %v1606 = vpop.f32.mrb[0].mxu0
      %v1607 = vadd.f32 0.0, %v1606
      %v1608 = vpop.f32.mrb[0].mxu0
      %v1609 = vpop.f32.mrb[0].mxu0
      %v1610 = vadd.f32 0.0, %v1609
      %v1611 = vpop.f32.mrb[0].mxu0
      %1612 = vmatprep.mubr.bf16.mxu0 0
      %1613 = vmatmul.mubr.bf16.gmra.mrb[0].mxu0 %v1497
      %v1614 = vpop.f32.mrb[0].mxu0
      %v1615 = vadd.f32 0.0, %v1614
      %v1616 = vpop.f32.mrb[0].mxu0
      %v1617 = vpop.f32.mrb[0].mxu0
      %v1618 = vadd.f32 0.0, %v1617
      %v1619 = vpop.f32.mrb[0].mxu0
      %1620 = vmatprep.mubr.bf16.mxu0 0
      %1621 = vmatmul.mubr.bf16.gmra.mrb[0].mxu0 %v1502
      %v1622 = vpop.f32.mrb[0].mxu0
      %v1623 = vadd.f32 0.0, %v1622
      %v1624 = vpop.f32.mrb[0].mxu0
      %v1625 = vpop.f32.mrb[0].mxu0
      %v1626 = vpop.f32.mrb[0].mxu0
      %1627 = vdwg.mxu0
      %v1628 = vadd.f32 %v1421, %v1591
      %v1629 = vadd.f32 %v1422, %v1594
      %v1630 = vadd.f32 %v1423, %v1599
      %v1631 = vadd.f32 %v1424, %v1602
      %v1632 = vadd.f32 %v1425, %v1607
      %v1633 = vadd.f32 %v1426, %v1610
      %v1634 = vadd.f32 %v1427, %v1615
      %v1635 = vadd.f32 %v1428, %v1618
      %v1636 = vadd.f32 %v1429, %v1623
      %v1637 = vld [vmem:[#allocation2 + $0x10] sm:$0xf0]
      %v1638 = vld [vmem:[#allocation2 + $0x18] sm:$0xff]
      %v1639 = vld [vmem:[#allocation2 + $0x20] sm:$0xff]
      %v1640 = vld [vmem:[#allocation2 + $0x28] sm:$0xff]
      %v1641 = vld [vmem:[#allocation2 + $0x30] sm:$0xff]
      %v1642 = vld [vmem:[#allocation2 + $0x38] sm:$0x1]
      %s1643 = scalar_lea.vmem %s2, 384
      %v1644 = vld [vmem:[%s1643] sm:$0xf]
      %v1645 = vld [vmem:[%s1643 + $0x4] sm:$0xf]
      %v1646 = vld [vmem:[%s1643 + $0x8] sm:$0xf]
      %v1647 = vld [vmem:[%s1643 + $0xc] sm:$0xf]
      %v1648 = vld [vmem:[%s1643 + $0x10] sm:$0xf]
      %v1649 = vld [vmem:[%s1643 + $0x14] sm:$0xf]
      %v1650 = vld [vmem:[%s1643 + $0x18] sm:$0xf]
      %v1651 = vld [vmem:[%s1643 + $0x1c] sm:$0xf]
      %v1652 = vld [vmem:[%s1643 + $0x20] sm:$0xf]
      %v1653 = vld [vmem:[%s1643 + $0x24] sm:$0xf]
      %v1654 = vld [vmem:[%s1643 + $0x28] sm:$0xf]
      %v1655 = vld [vmem:[%s1643 + $0x2c] sm:$0xf]
      %v1656 = vld [vmem:[%s1643 + $0x30] sm:$0xf]
      %v1657 = vld [vmem:[%s1643 + $0x34] sm:$0xf]
      %v1658 = vld [vmem:[%s1643 + $0x38] sm:$0xf]
      %v1659 = vld [vmem:[%s1643 + $0x3c] sm:$0xf]
      %v1661 = vshrl.u32 %v1637, 16
      %v1663 = vrot.slane %v1661, 4
      %v1664 = vshll.u32 %v1637, 16
      %v1666 = vrot.slane %v1664, 5
      %v1667 = vor.u32 %v1663, %v1666
      %v1669 = vshrl.u32 %v1638, 16
      %v1671 = vrot.slane %v1669, 4
      %v1672 = vshll.u32 %v1638, 16
      %v1674 = vrot.slane %v1672, 5
      %v1675 = vor.u32 %v1671, %v1674
      %v1676 = vsel %vm1453, %v1667, %v1675
      %v1678 = vshrl.u32 %v1639, 16
      %v1680 = vrot.slane %v1678, 4
      %v1681 = vshll.u32 %v1639, 16
      %v1683 = vrot.slane %v1681, 5
      %v1684 = vor.u32 %v1680, %v1683
      %v1685 = vsel %vm1453, %v1675, %v1684
      %v1687 = vshrl.u32 %v1640, 16
      %v1689 = vrot.slane %v1687, 4
      %v1690 = vshll.u32 %v1640, 16
      %v1692 = vrot.slane %v1690, 5
      %v1693 = vor.u32 %v1689, %v1692
      %v1694 = vsel %vm1453, %v1684, %v1693
      %v1696 = vshrl.u32 %v1641, 16
      %v1698 = vrot.slane %v1696, 4
      %v1699 = vshll.u32 %v1641, 16
      %v1701 = vrot.slane %v1699, 5
      %v1702 = vor.u32 %v1698, %v1701
      %v1703 = vsel %vm1453, %v1693, %v1702
      %v1705 = vshll.u32 %v1642, 16
      %v1707 = vrot.slane %v1705, 5
      %v1708 = vsel %vm1453, %v1702, %v1707
      %v1730 = vunpack.c.l.b16 %v1644
      %v1731 = vunpack.c.l.b16 %v1645
      %v1732 = vunpack.c.l.b16 %v1646
      %v1733 = vunpack.c.l.b16 %v1647
      %v1734 = vunpack.c.l.b16 %v1648
      %v1735 = vunpack.c.l.b16 %v1649
      %v1736 = vunpack.c.l.b16 %v1650
      %v1737 = vunpack.c.l.b16 %v1651
      %v1738 = vunpack.c.l.b16 %v1652
      %v1739 = vunpack.c.l.b16 %v1653
      %v1740 = vunpack.c.l.b16 %v1654
      %v1741 = vunpack.c.l.b16 %v1655
      %v1742 = vunpack.c.l.b16 %v1656
      %v1743 = vunpack.c.l.b16 %v1657
      %v1744 = vunpack.c.l.b16 %v1658
      %v1745 = vunpack.c.l.b16 %v1659
      %v1746 = vpack.c.b16 %v1731, %v1730
      %v1747 = vpack.c.b16 %v1733, %v1732
      %v1748 = vpack.c.b16 %v1735, %v1734
      %v1749 = vpack.c.b16 %v1737, %v1736
      %v1750 = vpack.c.b16 %v1739, %v1738
      %v1751 = vpack.c.b16 %v1741, %v1740
      %v1752 = vpack.c.b16 %v1743, %v1742
      %v1753 = vpack.c.b16 %v1745, %v1744
      %1762 = vmatprep.subr.bf16.mxu0 0
      %1763 = vmatpush1.bf16.msra.mxu0 %v1746
      %1764 = vmatprep.subr.bf16.mxu0 0
      %1765 = vmatpush1.bf16.msra.mxu0 %v1747
      %1766 = vmatprep.subr.bf16.mxu0 0
      %1767 = vmatpush1.bf16.msra.mxu0 %v1748
      %1768 = vmatprep.subr.bf16.mxu0 0
      %1769 = vmatpush1.bf16.msra.mxu0 %v1749
      %1770 = vmatprep.subr.bf16.mxu0 0
      %1771 = vmatpush1.bf16.msra.mxu0 %v1750
      %1772 = vmatprep.subr.bf16.mxu0 0
      %1773 = vmatpush1.bf16.msra.mxu0 %v1751
      %1774 = vmatprep.subr.bf16.mxu0 0
      %1775 = vmatpush1.bf16.msra.mxu0 %v1752
      %1776 = vmatprep.subr.bf16.mxu0 0
      %1777 = vmatpush1.bf16.msra.mxu0 %v1753
      %1778 = vmatprep.subr.bf16.mxu0 0
      %1779 = vmatpush1.bf16.msra.mxu0 0
      %1780 = vmatprep.subr.bf16.mxu0 0
      %1781 = vmatpush1.bf16.msra.mxu0 0
      %1782 = vmatprep.subr.bf16.mxu0 0
      %1783 = vmatpush1.bf16.msra.mxu0 0
      %1784 = vmatprep.subr.bf16.mxu0 0
      %1785 = vmatpush1.bf16.msra.mxu0 0
      %1786 = vmatprep.subr.bf16.mxu0 0
      %1787 = vmatpush1.bf16.msra.mxu0 0
      %1788 = vmatprep.subr.bf16.mxu0 0
      %1789 = vmatpush1.bf16.msra.mxu0 0
      %1790 = vmatprep.subr.bf16.mxu0 0
      %1791 = vmatpush1.bf16.msra.mxu0 0
      %1792 = vmatprep.subr.bf16.mxu0 0
      %1793 = vmatpush1.bf16.msra.mxu0 0
      %1794 = vmatprep.mubr.bf16.mxu0 0
      %1795 = vmatmul.mubr.bf16.gmra.mrb[0].mxu0 %v1676
      %v1796 = vpop.f32.mrb[0].mxu0
      %v1797 = vadd.f32 0.0, %v1796
      %v1798 = vpop.f32.mrb[0].mxu0
      %v1799 = vpop.f32.mrb[0].mxu0
      %v1800 = vadd.f32 0.0, %v1799
      %v1801 = vpop.f32.mrb[0].mxu0
      %1802 = vmatprep.mubr.bf16.mxu0 0
      %1803 = vmatmul.mubr.bf16.gmra.mrb[0].mxu0 %v1685
      %v1804 = vpop.f32.mrb[0].mxu0
      %v1805 = vadd.f32 0.0, %v1804
      %v1806 = vpop.f32.mrb[0].mxu0
      %v1807 = vpop.f32.mrb[0].mxu0
      %v1808 = vadd.f32 0.0, %v1807
      %v1809 = vpop.f32.mrb[0].mxu0
      %1810 = vmatprep.mubr.bf16.mxu0 0
      %1811 = vmatmul.mubr.bf16.gmra.mrb[0].mxu0 %v1694
      %v1812 = vpop.f32.mrb[0].mxu0
      %v1813 = vadd.f32 0.0, %v1812
      %v1814 = vpop.f32.mrb[0].mxu0
      %v1815 = vpop.f32.mrb[0].mxu0
      %v1816 = vadd.f32 0.0, %v1815
      %v1817 = vpop.f32.mrb[0].mxu0
      %1818 = vmatprep.mubr.bf16.mxu0 0
      %1819 = vmatmul.mubr.bf16.gmra.mrb[0].mxu0 %v1703
      %v1820 = vpop.f32.mrb[0].mxu0
      %v1821 = vadd.f32 0.0, %v1820
      %v1822 = vpop.f32.mrb[0].mxu0
      %v1823 = vpop.f32.mrb[0].mxu0
      %v1824 = vadd.f32 0.0, %v1823
      %v1825 = vpop.f32.mrb[0].mxu0
      %1826 = vmatprep.mubr.bf16.mxu0 0
      %1827 = vmatmul.mubr.bf16.gmra.mrb[0].mxu0 %v1708
      %v1828 = vpop.f32.mrb[0].mxu0
      %v1829 = vadd.f32 0.0, %v1828
      %v1830 = vpop.f32.mrb[0].mxu0
      %v1831 = vpop.f32.mrb[0].mxu0
      %v1832 = vpop.f32.mrb[0].mxu0
      %1833 = vdwg.mxu0
      %v1834 = vadd.f32 %v1628, %v1797
      %v1835 = vadd.f32 %v1629, %v1800
      %v1836 = vadd.f32 %v1630, %v1805
      %v1837 = vadd.f32 %v1631, %v1808
      %v1838 = vadd.f32 %v1632, %v1813
      %v1839 = vadd.f32 %v1633, %v1816
      %v1840 = vadd.f32 %v1634, %v1821
      %v1841 = vadd.f32 %v1635, %v1824
      %v1842 = vadd.f32 %v1636, %v1829
      %v1843 = vld [vmem:[#allocation2 + $0x10] sm:$0xe0]
      %s1844 = scalar_lea.vmem %s2, 448
      %v1845 = vld [vmem:[%s1844] sm:$0xf]
      %v1846 = vld [vmem:[%s1844 + $0x4] sm:$0xf]
      %v1847 = vld [vmem:[%s1844 + $0x8] sm:$0xf]
      %v1848 = vld [vmem:[%s1844 + $0xc] sm:$0xf]
      %v1849 = vld [vmem:[%s1844 + $0x10] sm:$0xf]
      %v1850 = vld [vmem:[%s1844 + $0x14] sm:$0xf]
      %v1851 = vld [vmem:[%s1844 + $0x18] sm:$0xf]
      %v1852 = vld [vmem:[%s1844 + $0x1c] sm:$0xf]
      %v1853 = vld [vmem:[%s1844 + $0x20] sm:$0xf]
      %v1854 = vld [vmem:[%s1844 + $0x24] sm:$0xf]
      %v1855 = vld [vmem:[%s1844 + $0x28] sm:$0xf]
      %v1856 = vld [vmem:[%s1844 + $0x2c] sm:$0xf]
      %v1857 = vld [vmem:[%s1844 + $0x30] sm:$0xf]
      %v1858 = vld [vmem:[%s1844 + $0x34] sm:$0xf]
      %v1859 = vld [vmem:[%s1844 + $0x38] sm:$0xf]
      %v1860 = vld [vmem:[%s1844 + $0x3c] sm:$0xf]
      %vm1867 = vcmask 1042432
      %v1868 = vrot.slane %v1843, 5
      %v1869 = vrot.slane %v1638, 5
      %v1870 = vsel %vm1867, %v1868, %v1869
      %v1871 = vrot.slane %v1639, 5
      %v1872 = vsel %vm1867, %v1869, %v1871
      %v1873 = vrot.slane %v1640, 5
      %v1874 = vsel %vm1867, %v1871, %v1873
      %v1875 = vrot.slane %v1641, 5
      %v1876 = vsel %vm1867, %v1873, %v1875
      %v1877 = vrot.slane %v1642, 5
      %v1878 = vsel %vm1867, %v1875, %v1877
      %v1900 = vunpack.c.l.b16 %v1845
      %v1901 = vunpack.c.l.b16 %v1846
      %v1902 = vunpack.c.l.b16 %v1847
      %v1903 = vunpack.c.l.b16 %v1848
      %v1904 = vunpack.c.l.b16 %v1849
      %v1905 = vunpack.c.l.b16 %v1850
      %v1906 = vunpack.c.l.b16 %v1851
      %v1907 = vunpack.c.l.b16 %v1852
      %v1908 = vunpack.c.l.b16 %v1853
      %v1909 = vunpack.c.l.b16 %v1854
      %v1910 = vunpack.c.l.b16 %v1855
      %v1911 = vunpack.c.l.b16 %v1856
      %v1912 = vunpack.c.l.b16 %v1857
      %v1913 = vunpack.c.l.b16 %v1858
      %v1914 = vunpack.c.l.b16 %v1859
      %v1915 = vunpack.c.l.b16 %v1860
      %v1916 = vpack.c.b16 %v1901, %v1900
      %v1917 = vpack.c.b16 %v1903, %v1902
      %v1918 = vpack.c.b16 %v1905, %v1904
      %v1919 = vpack.c.b16 %v1907, %v1906
      %v1920 = vpack.c.b16 %v1909, %v1908
      %v1921 = vpack.c.b16 %v1911, %v1910
      %v1922 = vpack.c.b16 %v1913, %v1912
      %v1923 = vpack.c.b16 %v1915, %v1914
      %1932 = vmatprep.subr.bf16.mxu0 0
      %1933 = vmatpush1.bf16.msra.mxu0 %v1916
      %1934 = vmatprep.subr.bf16.mxu0 0
      %1935 = vmatpush1.bf16.msra.mxu0 %v1917
      %1936 = vmatprep.subr.bf16.mxu0 0
      %1937 = vmatpush1.bf16.msra.mxu0 %v1918
      %1938 = vmatprep.subr.bf16.mxu0 0
      %1939 = vmatpush1.bf16.msra.mxu0 %v1919
      %1940 = vmatprep.subr.bf16.mxu0 0
      %1941 = vmatpush1.bf16.msra.mxu0 %v1920
      %1942 = vmatprep.subr.bf16.mxu0 0
      %1943 = vmatpush1.bf16.msra.mxu0 %v1921
      %1944 = vmatprep.subr.bf16.mxu0 0
      %1945 = vmatpush1.bf16.msra.mxu0 %v1922
      %1946 = vmatprep.subr.bf16.mxu0 0
      %1947 = vmatpush1.bf16.msra.mxu0 %v1923
      %1948 = vmatprep.subr.bf16.mxu0 0
      %1949 = vmatpush1.bf16.msra.mxu0 0
      %1950 = vmatprep.subr.bf16.mxu0 0
      %1951 = vmatpush1.bf16.msra.mxu0 0
      %1952 = vmatprep.subr.bf16.mxu0 0
      %1953 = vmatpush1.bf16.msra.mxu0 0
      %1954 = vmatprep.subr.bf16.mxu0 0
      %1955 = vmatpush1.bf16.msra.mxu0 0
      %1956 = vmatprep.subr.bf16.mxu0 0
      %1957 = vmatpush1.bf16.msra.mxu0 0
      %1958 = vmatprep.subr.bf16.mxu0 0
      %1959 = vmatpush1.bf16.msra.mxu0 0
      %1960 = vmatprep.subr.bf16.mxu0 0
      %1961 = vmatpush1.bf16.msra.mxu0 0
      %1962 = vmatprep.subr.bf16.mxu0 0
      %1963 = vmatpush1.bf16.msra.mxu0 0
      %1964 = vmatprep.mubr.bf16.mxu0 0
      %1965 = vmatmul.mubr.bf16.gmra.mrb[0].mxu0 %v1870
      %v1966 = vpop.f32.mrb[0].mxu0
      %v1967 = vadd.f32 0.0, %v1966
      %v1968 = vpop.f32.mrb[0].mxu0
      %v1969 = vpop.f32.mrb[0].mxu0
      %v1970 = vadd.f32 0.0, %v1969
      %v1971 = vpop.f32.mrb[0].mxu0
      %1972 = vmatprep.mubr.bf16.mxu0 0
      %1973 = vmatmul.mubr.bf16.gmra.mrb[0].mxu0 %v1872
      %v1974 = vpop.f32.mrb[0].mxu0
      %v1975 = vadd.f32 0.0, %v1974
      %v1976 = vpop.f32.mrb[0].mxu0
      %v1977 = vpop.f32.mrb[0].mxu0
      %v1978 = vadd.f32 0.0, %v1977
      %v1979 = vpop.f32.mrb[0].mxu0
      %1980 = vmatprep.mubr.bf16.mxu0 0
      %1981 = vmatmul.mubr.bf16.gmra.mrb[0].mxu0 %v1874
      %v1982 = vpop.f32.mrb[0].mxu0
      %v1983 = vadd.f32 0.0, %v1982
      %v1984 = vpop.f32.mrb[0].mxu0
      %v1985 = vpop.f32.mrb[0].mxu0
      %v1986 = vadd.f32 0.0, %v1985
      %v1987 = vpop.f32.mrb[0].mxu0
      %1988 = vmatprep.mubr.bf16.mxu0 0
      %1989 = vmatmul.mubr.bf16.gmra.mrb[0].mxu0 %v1876
      %v1990 = vpop.f32.mrb[0].mxu0
      %v1991 = vadd.f32 0.0, %v1990
      %v1992 = vpop.f32.mrb[0].mxu0
      %v1993 = vpop.f32.mrb[0].mxu0
      %v1994 = vadd.f32 0.0, %v1993
      %v1995 = vpop.f32.mrb[0].mxu0
      %1996 = vmatprep.mubr.bf16.mxu0 0
      %1997 = vmatmul.mubr.bf16.gmra.mrb[0].mxu0 %v1878
      %v1998 = vpop.f32.mrb[0].mxu0
      %v1999 = vadd.f32 0.0, %v1998
      %v2000 = vpop.f32.mrb[0].mxu0
      %v2001 = vpop.f32.mrb[0].mxu0
      %v2002 = vpop.f32.mrb[0].mxu0
      %2003 = vdwg.mxu0
      %v2004 = vadd.f32 %v1834, %v1967
      %v2005 = vadd.f32 %v1835, %v1970
      %v2006 = vadd.f32 %v1836, %v1975
      %v2007 = vadd.f32 %v1837, %v1978
      %v2008 = vadd.f32 %v1838, %v1983
      %v2009 = vadd.f32 %v1839, %v1986
      %v2010 = vadd.f32 %v1840, %v1991
      %v2011 = vadd.f32 %v1841, %v1994
      %v2012 = vadd.f32 %v1842, %v1999
      %v2013 = vld [vmem:[#allocation2 + $0x38] sm:$0x3]
      %s2014 = scalar_lea.vmem %s2, 512
      %v2015 = vld [vmem:[%s2014] sm:$0xf]
      %v2016 = vld [vmem:[%s2014 + $0x4] sm:$0xf]
      %v2017 = vld [vmem:[%s2014 + $0x8] sm:$0xf]
      %v2018 = vld [vmem:[%s2014 + $0xc] sm:$0xf]
      %v2019 = vld [vmem:[%s2014 + $0x10] sm:$0xf]
      %v2020 = vld [vmem:[%s2014 + $0x14] sm:$0xf]
      %v2021 = vld [vmem:[%s2014 + $0x18] sm:$0xf]
      %v2022 = vld [vmem:[%s2014 + $0x1c] sm:$0xf]
      %v2023 = vld [vmem:[%s2014 + $0x20] sm:$0xf]
      %v2024 = vld [vmem:[%s2014 + $0x24] sm:$0xf]
      %v2025 = vld [vmem:[%s2014 + $0x28] sm:$0xf]
      %v2026 = vld [vmem:[%s2014 + $0x2c] sm:$0xf]
      %v2027 = vld [vmem:[%s2014 + $0x30] sm:$0xf]
      %v2028 = vld [vmem:[%s2014 + $0x34] sm:$0xf]
      %v2029 = vld [vmem:[%s2014 + $0x38] sm:$0xf]
      %v2030 = vld [vmem:[%s2014 + $0x3c] sm:$0xf]
      %v2032 = vshrl.u32 %v1843, 16
      %v2034 = vrot.slane %v2032, 5
      %v2035 = vshll.u32 %v1843, 16
      %v2037 = vrot.slane %v2035, 6
      %v2038 = vor.u32 %v2034, %v2037
      %v2039 = vrot.slane %v1669, 5
      %v2040 = vrot.slane %v1672, 6
      %v2041 = vor.u32 %v2039, %v2040
      %v2042 = vsel %vm473, %v2038, %v2041
      %v2043 = vrot.slane %v1678, 5
      %v2044 = vrot.slane %v1681, 6
      %v2045 = vor.u32 %v2043, %v2044
      %v2046 = vsel %vm473, %v2041, %v2045
      %v2047 = vrot.slane %v1687, 5
      %v2048 = vrot.slane %v1690, 6
      %v2049 = vor.u32 %v2047, %v2048
      %v2050 = vsel %vm473, %v2045, %v2049
      %v2051 = vrot.slane %v1696, 5
      %v2052 = vrot.slane %v1699, 6
      %v2053 = vor.u32 %v2051, %v2052
      %v2054 = vsel %vm473, %v2049, %v2053
      %v2056 = vshrl.u32 %v2013, 16
      %v2058 = vrot.slane %v2056, 5
      %v2059 = vshll.u32 %v2013, 16
      %v2061 = vrot.slane %v2059, 6
      %v2062 = vor.u32 %v2058, %v2061
      %v2063 = vsel %vm473, %v2053, %v2062
      %v2085 = vunpack.c.l.b16 %v2015
      %v2086 = vunpack.c.l.b16 %v2016
      %v2087 = vunpack.c.l.b16 %v2017
      %v2088 = vunpack.c.l.b16 %v2018
      %v2089 = vunpack.c.l.b16 %v2019
      %v2090 = vunpack.c.l.b16 %v2020
      %v2091 = vunpack.c.l.b16 %v2021
      %v2092 = vunpack.c.l.b16 %v2022
      %v2093 = vunpack.c.l.b16 %v2023
      %v2094 = vunpack.c.l.b16 %v2024
      %v2095 = vunpack.c.l.b16 %v2025
      %v2096 = vunpack.c.l.b16 %v2026
      %v2097 = vunpack.c.l.b16 %v2027
      %v2098 = vunpack.c.l.b16 %v2028
      %v2099 = vunpack.c.l.b16 %v2029
      %v2100 = vunpack.c.l.b16 %v2030
      %v2101 = vpack.c.b16 %v2086, %v2085
      %v2102 = vpack.c.b16 %v2088, %v2087
      %v2103 = vpack.c.b16 %v2090, %v2089
      %v2104 = vpack.c.b16 %v2092, %v2091
      %v2105 = vpack.c.b16 %v2094, %v2093
      %v2106 = vpack.c.b16 %v2096, %v2095
      %v2107 = vpack.c.b16 %v2098, %v2097
      %v2108 = vpack.c.b16 %v2100, %v2099
      %2117 = vmatprep.subr.bf16.mxu0 0
      %2118 = vmatpush1.bf16.msra.mxu0 %v2101
      %2119 = vmatprep.subr.bf16.mxu0 0
      %2120 = vmatpush1.bf16.msra.mxu0 %v2102
      %2121 = vmatprep.subr.bf16.mxu0 0
      %2122 = vmatpush1.bf16.msra.mxu0 %v2103
      %2123 = vmatprep.subr.bf16.mxu0 0
      %2124 = vmatpush1.bf16.msra.mxu0 %v2104
      %2125 = vmatprep.subr.bf16.mxu0 0
      %2126 = vmatpush1.bf16.msra.mxu0 %v2105
      %2127 = vmatprep.subr.bf16.mxu0 0
      %2128 = vmatpush1.bf16.msra.mxu0 %v2106
      %2129 = vmatprep.subr.bf16.mxu0 0
      %2130 = vmatpush1.bf16.msra.mxu0 %v2107
      %2131 = vmatprep.subr.bf16.mxu0 0
      %2132 = vmatpush1.bf16.msra.mxu0 %v2108
      %2133 = vmatprep.subr.bf16.mxu0 0
      %2134 = vmatpush1.bf16.msra.mxu0 0
      %2135 = vmatprep.subr.bf16.mxu0 0
      %2136 = vmatpush1.bf16.msra.mxu0 0
      %2137 = vmatprep.subr.bf16.mxu0 0
      %2138 = vmatpush1.bf16.msra.mxu0 0
      %2139 = vmatprep.subr.bf16.mxu0 0
      %2140 = vmatpush1.bf16.msra.mxu0 0
      %2141 = vmatprep.subr.bf16.mxu0 0
      %2142 = vmatpush1.bf16.msra.mxu0 0
      %2143 = vmatprep.subr.bf16.mxu0 0
      %2144 = vmatpush1.bf16.msra.mxu0 0
      %2145 = vmatprep.subr.bf16.mxu0 0
      %2146 = vmatpush1.bf16.msra.mxu0 0
      %2147 = vmatprep.subr.bf16.mxu0 0
      %2148 = vmatpush1.bf16.msra.mxu0 0
      %2149 = vmatprep.mubr.bf16.mxu0 0
      %2150 = vmatmul.mubr.bf16.gmra.mrb[0].mxu0 %v2042
      %v2151 = vpop.f32.mrb[0].mxu0
      %v2152 = vadd.f32 0.0, %v2151
      %v2153 = vpop.f32.mrb[0].mxu0
      %v2154 = vpop.f32.mrb[0].mxu0
      %v2155 = vadd.f32 0.0, %v2154
      %v2156 = vpop.f32.mrb[0].mxu0
      %2157 = vmatprep.mubr.bf16.mxu0 0
      %2158 = vmatmul.mubr.bf16.gmra.mrb[0].mxu0 %v2046
      %v2159 = vpop.f32.mrb[0].mxu0
      %v2160 = vadd.f32 0.0, %v2159
      %v2161 = vpop.f32.mrb[0].mxu0
      %v2162 = vpop.f32.mrb[0].mxu0
      %v2163 = vadd.f32 0.0, %v2162
      %v2164 = vpop.f32.mrb[0].mxu0
      %2165 = vmatprep.mubr.bf16.mxu0 0
      %2166 = vmatmul.mubr.bf16.gmra.mrb[0].mxu0 %v2050
      %v2167 = vpop.f32.mrb[0].mxu0
      %v2168 = vadd.f32 0.0, %v2167
      %v2169 = vpop.f32.mrb[0].mxu0
      %v2170 = vpop.f32.mrb[0].mxu0
      %v2171 = vadd.f32 0.0, %v2170
      %v2172 = vpop.f32.mrb[0].mxu0
      %2173 = vmatprep.mubr.bf16.mxu0 0
      %2174 = vmatmul.mubr.bf16.gmra.mrb[0].mxu0 %v2054
      %v2175 = vpop.f32.mrb[0].mxu0
      %v2176 = vadd.f32 0.0, %v2175
      %v2177 = vpop.f32.mrb[0].mxu0
      %v2178 = vpop.f32.mrb[0].mxu0
      %v2179 = vadd.f32 0.0, %v2178
      %v2180 = vpop.f32.mrb[0].mxu0
      %2181 = vmatprep.mubr.bf16.mxu0 0
      %2182 = vmatmul.mubr.bf16.gmra.mrb[0].mxu0 %v2063
      %v2183 = vpop.f32.mrb[0].mxu0
      %v2184 = vadd.f32 0.0, %v2183
      %v2185 = vpop.f32.mrb[0].mxu0
      %v2186 = vpop.f32.mrb[0].mxu0
      %v2187 = vpop.f32.mrb[0].mxu0
      %2188 = vdwg.mxu0
      %v2189 = vadd.f32 %v2004, %v2152
      %v2190 = vadd.f32 %v2005, %v2155
      %v2191 = vadd.f32 %v2006, %v2160
      %v2192 = vadd.f32 %v2007, %v2163
      %v2193 = vadd.f32 %v2008, %v2168
      %v2194 = vadd.f32 %v2009, %v2171
      %v2195 = vadd.f32 %v2010, %v2176
      %v2196 = vadd.f32 %v2011, %v2179
      %v2197 = vadd.f32 %v2012, %v2184
      %v2198 = vmul.f32 %v2189, %v2189
      %v2199 = vmul.f32 %v2190, %v2190
      %v2200 = vmul.f32 %v2191, %v2191
      %v2201 = vmul.f32 %v2192, %v2192
      %v2202 = vmul.f32 %v2193, %v2193
      %v2203 = vmul.f32 %v2194, %v2194
      %v2204 = vmul.f32 %v2195, %v2195
      %v2205 = vmul.f32 %v2196, %v2196
      %v2206 = vmul.f32 %v2197, %v2197
      %v2207 = vpack.c.bf16 %v2199, %v2198
      %v2208 = vpack.c.bf16 %v2201, %v2200
      %v2209 = vpack.c.bf16 %v2203, %v2202
      %v2210 = vpack.c.bf16 %v2205, %v2204
      %v2211 = vpack.c.bf16 %v2206, %v2206
      %v2212 = vld [vmem:[%s4] sm:$0xf]
      %v2213 = vld [vmem:[%s4 + $0x4] sm:$0xf]
      %v2214 = vld [vmem:[%s4 + $0x8] sm:$0xf]
      %v2215 = vld [vmem:[%s4 + $0xc] sm:$0xf]
      %v2216 = vld [vmem:[%s4 + $0x10] sm:$0xf]
      %v2217 = vld [vmem:[%s4 + $0x14] sm:$0xf]
      %v2218 = vld [vmem:[%s4 + $0x18] sm:$0xf]
      %v2219 = vld [vmem:[%s4 + $0x1c] sm:$0xf]
      %v2220 = vld [vmem:[%s4 + $0x20] sm:$0xf]
      %v2221 = vld [vmem:[%s4 + $0x24] sm:$0xf]
      %v2222 = vld [vmem:[%s4 + $0x28] sm:$0xf]
      %v2223 = vld [vmem:[%s4 + $0x2c] sm:$0xf]
      %v2224 = vld [vmem:[%s4 + $0x30] sm:$0xf]
      %v2225 = vld [vmem:[%s4 + $0x34] sm:$0xf]
      %v2226 = vld [vmem:[%s4 + $0x38] sm:$0xf]
      %v2227 = vld [vmem:[%s4 + $0x3c] sm:$0xf]
      %v2244 = vunpack.c.l.b16 %v2212
      %v2245 = vunpack.c.l.b16 %v2213
      %v2246 = vunpack.c.l.b16 %v2214
      %v2247 = vunpack.c.l.b16 %v2215
      %v2248 = vunpack.c.l.b16 %v2216
      %v2249 = vunpack.c.l.b16 %v2217
      %v2250 = vunpack.c.l.b16 %v2218
      %v2251 = vunpack.c.l.b16 %v2219
      %v2252 = vunpack.c.l.b16 %v2220
      %v2253 = vunpack.c.l.b16 %v2221
      %v2254 = vunpack.c.l.b16 %v2222
      %v2255 = vunpack.c.l.b16 %v2223
      %v2256 = vunpack.c.l.b16 %v2224
      %v2257 = vunpack.c.l.b16 %v2225
      %v2258 = vunpack.c.l.b16 %v2226
      %v2259 = vunpack.c.l.b16 %v2227
      %v2260 = vpack.c.b16 %v2245, %v2244
      %v2261 = vpack.c.b16 %v2247, %v2246
      %v2262 = vpack.c.b16 %v2249, %v2248
      %v2263 = vpack.c.b16 %v2251, %v2250
      %v2264 = vpack.c.b16 %v2253, %v2252
      %v2265 = vpack.c.b16 %v2255, %v2254
      %v2266 = vpack.c.b16 %v2257, %v2256
      %v2267 = vpack.c.b16 %v2259, %v2258
      %2276 = vmatprep.subr.bf16.mxu0 0
      %2277 = vmatpush1.bf16.msra.mxu0 %v2260
      %2278 = vmatprep.subr.bf16.mxu0 0
      %2279 = vmatpush1.bf16.msra.mxu0 %v2261
      %2280 = vmatprep.subr.bf16.mxu0 0
      %2281 = vmatpush1.bf16.msra.mxu0 %v2262
      %2282 = vmatprep.subr.bf16.mxu0 0
      %2283 = vmatpush1.bf16.msra.mxu0 %v2263
      %2284 = vmatprep.subr.bf16.mxu0 0
      %2285 = vmatpush1.bf16.msra.mxu0 %v2264
      %2286 = vmatprep.subr.bf16.mxu0 0
      %2287 = vmatpush1.bf16.msra.mxu0 %v2265
      %2288 = vmatprep.subr.bf16.mxu0 0
      %2289 = vmatpush1.bf16.msra.mxu0 %v2266
      %2290 = vmatprep.subr.bf16.mxu0 0
      %2291 = vmatpush1.bf16.msra.mxu0 %v2267
      %2292 = vmatprep.subr.bf16.mxu0 0
      %2293 = vmatpush1.bf16.msra.mxu0 0
      %2294 = vmatprep.subr.bf16.mxu0 0
      %2295 = vmatpush1.bf16.msra.mxu0 0
      %2296 = vmatprep.subr.bf16.mxu0 0
      %2297 = vmatpush1.bf16.msra.mxu0 0
      %2298 = vmatprep.subr.bf16.mxu0 0
      %2299 = vmatpush1.bf16.msra.mxu0 0
      %2300 = vmatprep.subr.bf16.mxu0 0
      %2301 = vmatpush1.bf16.msra.mxu0 0
      %2302 = vmatprep.subr.bf16.mxu0 0
      %2303 = vmatpush1.bf16.msra.mxu0 0
      %2304 = vmatprep.subr.bf16.mxu0 0
      %2305 = vmatpush1.bf16.msra.mxu0 0
      %2306 = vmatprep.subr.bf16.mxu0 0
      %2307 = vmatpush1.bf16.msra.mxu0 0
      %2308 = vmatprep.mubr.bf16.mxu0 0
      %2309 = vmatmul.mubr.bf16.gmra.mrb[0].mxu0 %v2207
      %v2310 = vpop.f32.mrb[0].mxu0
      %v2311 = vadd.f32 0.0, %v2310
      %v2312 = vpop.f32.mrb[0].mxu0
      %v2313 = vpop.f32.mrb[0].mxu0
      %v2314 = vadd.f32 0.0, %v2313
      %v2315 = vpop.f32.mrb[0].mxu0
      %2316 = vmatprep.mubr.bf16.mxu0 0
      %2317 = vmatmul.mubr.bf16.gmra.mrb[0].mxu0 %v2208
      %v2318 = vpop.f32.mrb[0].mxu0
      %v2319 = vadd.f32 0.0, %v2318
      %v2320 = vpop.f32.mrb[0].mxu0
      %v2321 = vpop.f32.mrb[0].mxu0
      %v2322 = vadd.f32 0.0, %v2321
      %v2323 = vpop.f32.mrb[0].mxu0
      %2324 = vmatprep.mubr.bf16.mxu0 0
      %2325 = vmatmul.mubr.bf16.gmra.mrb[0].mxu0 %v2209
      %v2326 = vpop.f32.mrb[0].mxu0
      %v2327 = vadd.f32 0.0, %v2326
      %v2328 = vpop.f32.mrb[0].mxu0
      %v2329 = vpop.f32.mrb[0].mxu0
      %v2330 = vadd.f32 0.0, %v2329
      %v2331 = vpop.f32.mrb[0].mxu0
      %2332 = vmatprep.mubr.bf16.mxu0 0
      %2333 = vmatmul.mubr.bf16.gmra.mrb[0].mxu0 %v2210
      %v2334 = vpop.f32.mrb[0].mxu0
      %v2335 = vadd.f32 0.0, %v2334
      %v2336 = vpop.f32.mrb[0].mxu0
      %v2337 = vpop.f32.mrb[0].mxu0
      %v2338 = vadd.f32 0.0, %v2337
      %v2339 = vpop.f32.mrb[0].mxu0
      %2340 = vmatprep.mubr.bf16.mxu0 0
      %2341 = vmatmul.mubr.bf16.gmra.mrb[0].mxu0 %v2211
      %v2342 = vpop.f32.mrb[0].mxu0
      %v2343 = vadd.f32 0.0, %v2342
      %v2344 = vpop.f32.mrb[0].mxu0
      %v2345 = vpop.f32.mrb[0].mxu0
      %v2346 = vpop.f32.mrb[0].mxu0
      %2347 = vdwg.mxu0
      %v2348 = vmul.f32 %v2311, 2e-05
      %v2349 = vmul.f32 %v2314, 2e-05
      %v2350 = vmul.f32 %v2319, 2e-05
      %v2351 = vmul.f32 %v2322, 2e-05
      %v2352 = vmul.f32 %v2327, 2e-05
      %v2353 = vmul.f32 %v2330, 2e-05
      %v2354 = vmul.f32 %v2335, 2e-05
      %v2355 = vmul.f32 %v2338, 2e-05
      %v2356 = vmul.f32 %v2343, 2e-05
      %v2357 = vadd.f32 %v2348, 1.0
      %v2358 = vadd.f32 %v2349, 1.0
      %v2359 = vadd.f32 %v2350, 1.0
      %v2360 = vadd.f32 %v2351, 1.0
      %v2361 = vadd.f32 %v2352, 1.0
      %v2362 = vadd.f32 %v2353, 1.0
      %v2363 = vadd.f32 %v2354, 1.0
      %v2364 = vadd.f32 %v2355, 1.0
      %v2365 = vadd.f32 %v2356, 1.0
      %v2366 = vlog2.pop %v2357
      %v2367 = vmul.f32 %v2366, 0.6931472
      %v2368 = vlog2.pop %v2358
      %v2369 = vmul.f32 %v2368, 0.6931472
      %v2370 = vlog2.pop %v2359
      %v2371 = vmul.f32 %v2370, 0.6931472
      %v2372 = vlog2.pop %v2360
      %v2373 = vmul.f32 %v2372, 0.6931472
      %v2374 = vlog2.pop %v2361
      %v2375 = vmul.f32 %v2374, 0.6931472
      %v2376 = vlog2.pop %v2362
      %v2377 = vmul.f32 %v2376, 0.6931472
      %v2378 = vlog2.pop %v2363
      %v2379 = vmul.f32 %v2378, 0.6931472
      %v2380 = vlog2.pop %v2364
      %v2381 = vmul.f32 %v2380, 0.6931472
      %v2382 = vlog2.pop %v2365
      %v2383 = vmul.f32 %v2382, 0.6931472
      %v2384 = vmul.f32 %v2367, -0.75
      %v2385 = vmul.f32 %v2369, -0.75
      %v2386 = vmul.f32 %v2371, -0.75
      %v2387 = vmul.f32 %v2373, -0.75
      %v2388 = vmul.f32 %v2375, -0.75
      %v2389 = vmul.f32 %v2377, -0.75
      %v2390 = vmul.f32 %v2379, -0.75
      %v2391 = vmul.f32 %v2381, -0.75
      %v2392 = vmul.f32 %v2383, -0.75
      %v2393 = vmul.f32 %v2384, 1.442695
      %v2394 = vpow.pop %v2393
      %v2395 = vmul.f32 %v2385, 1.442695
      %v2396 = vpow.pop %v2395
      %v2397 = vmul.f32 %v2386, 1.442695
      %v2398 = vpow.pop %v2397
      %v2399 = vmul.f32 %v2387, 1.442695
      %v2400 = vpow.pop %v2399
      %v2401 = vmul.f32 %v2388, 1.442695
      %v2402 = vpow.pop %v2401
      %v2403 = vmul.f32 %v2389, 1.442695
      %v2404 = vpow.pop %v2403
      %v2405 = vmul.f32 %v2390, 1.442695
      %v2406 = vpow.pop %v2405
      %v2407 = vmul.f32 %v2391, 1.442695
      %v2408 = vpow.pop %v2407
      %v2409 = vmul.f32 %v2392, 1.442695
      %v2410 = vpow.pop %v2409
      %v2411 = vmul.f32 %v2189, %v2394
      %v2412 = vmul.f32 %v2190, %v2396
      %v2413 = vmul.f32 %v2191, %v2398
      %v2414 = vmul.f32 %v2192, %v2400
      %v2415 = vmul.f32 %v2193, %v2402
      %v2416 = vmul.f32 %v2194, %v2404
      %v2417 = vmul.f32 %v2195, %v2406
      %v2418 = vmul.f32 %v2196, %v2408
      %v2419 = vmul.f32 %v2197, %v2410
      %v2420 = vpack.c.bf16 %v2412, %v2411
      %v2421 = vpack.c.bf16 %v2414, %v2413
      %v2422 = vpack.c.bf16 %v2416, %v2415
      %v2423 = vpack.c.bf16 %v2418, %v2417
      %v2424 = vpack.c.bf16 %v2419, %v2419
      %v2430 = vunpack.c.l.b16 %v2420
      %v2431 = vunpack.c.h.b16 %v2420
      %v2432 = vunpack.c.l.b16 %v2421
      %v2433 = vunpack.c.h.b16 %v2421
      %v2434 = vunpack.c.l.b16 %v2422
      %v2435 = vunpack.c.h.b16 %v2422
      %v2436 = vunpack.c.l.b16 %v2423
      %v2437 = vunpack.c.h.b16 %v2423
      %v2438 = vunpack.c.l.b16 %v2424
      %v2439 = vpack.c.b16 %v2430, %v2430
      %v2440 = vpack.c.b16 %v2431, %v2431
      %v2441 = vpack.c.b16 %v2432, %v2432
      %v2442 = vpack.c.b16 %v2433, %v2433
      %v2443 = vpack.c.b16 %v2434, %v2434
      %v2444 = vpack.c.b16 %v2435, %v2435
      %v2445 = vpack.c.b16 %v2436, %v2436
      %v2446 = vpack.c.b16 %v2437, %v2437
      %v2447 = vpack.c.b16 %v2438, %v2438
      %2457 = vst [vmem:[%s224] sm:$0xf] %v2439
      %2458 = vst [vmem:[%s224 + $0x4] sm:$0xf] %v2440
      %2459 = vst [vmem:[%s224 + $0x8] sm:$0xf] %v2441
      %2460 = vst [vmem:[%s224 + $0xc] sm:$0xf] %v2442
      %2461 = vst [vmem:[%s224 + $0x10] sm:$0xf] %v2443
      %2462 = vst [vmem:[%s224 + $0x14] sm:$0xf] %v2444
      %2463 = vst [vmem:[%s224 + $0x18] sm:$0xf] %v2445
      %2464 = vst [vmem:[%s224 + $0x1c] sm:$0xf] %v2446
      %2465 = vst [vmem:[%s224 + $0x20] sm:$0xf] %v2447
      %p2466 = scmp.lt.s32.totalorder %s16, 1
      %s2467 = scalar_select %p2466, %s16, 1
      %s2468 = smul.addr %s2467, 9
      %s2469 = smul.addr %s2468, 4
      %s2470 = scalar_lea.vmem %s5, %s2469
      // Predicated region
      $region41: #{dcfnet_feature.1} parent=39 // pred_check
        %p2471 = pneg %p144
      $region42: #{dcfnet_feature.1} parent=39 // pred_check_branch
        %2473 = sbr.rel (%p2471) target = $region44
      $region43: #{dcfnet_feature.1} parent=39 // pred_region
        _
      $region44: #{dcfnet_feature.1} parent=39 // pred_fallthru
        _
    $region40: #{dcfnet_feature.1} parent=5 // pred_fallthru
      _
    %p2474 = scmp.le.s32.totalorder 2, %s11
    // Predicated region
    $region45: #{dcfnet_feature.1} parent=5 // pred_check
      %p2475 = pneg %p2474
    $region46: #{dcfnet_feature.1} parent=5 // pred_check_branch
      %2477 = sbr.rel (%p2475) target = $region48
    $region47: #{dcfnet_feature.1} parent=5 // pred_region
      %s2478 = ssub.s32 %s11, 2
      // Predicated region
      $region49: #{dcfnet_feature.1} parent=47 // pred_check
        %p2479 = pneg %p150
      $region50: #{dcfnet_feature.1} parent=47 // pred_check_branch
        %2481 = sbr.rel (%p2479) target = $region52
      $region51: #{dcfnet_feature.1} parent=47 // pred_region
        %p2482 = scmp.lt.s32.totalorder %s17, 1
        %s2483 = scalar_select %p2482, %s17, 1
        %s2484 = smul.addr %s2483, 9
        %s2485 = smul.addr %s2484, 4
        %s2486 = scalar_lea.vmem %s5, %s2485
      $region52: #{dcfnet_feature.1} parent=47 // pred_fallthru
        _
    $region48: #{dcfnet_feature.1} parent=5 // pred_fallthru
      _
  $region6: #{dcfnet_feature.1} parent=0 // loop_footer
    %s15 = sadd.s32 1, %s11
  $region7: #{dcfnet_feature.1} parent=0 // loop_footer_branch
    %10 = sbr.rel target = $region3
  $region8: #{dcfnet_feature.1} parent=0 // loop_exit
    _

</llo_original>
